<compile_context>
chip_gen: v5e
topology: v5e:2x2
jax: 0.10.0
libtpu: 0.0.40
codegen_flags: <defaults>
</compile_context>

<pallas_src>
import functools

import jax
import jax.numpy as jnp
from jax.experimental import pallas as pl
from jax.experimental.pallas import tpu as pltpu

HIDDEN_SIZE = 64
RNN_HIDDEN = HIDDEN_SIZE // 2


def bianet_kernel(en_ref, de_ref, wen_ref, wde_ref, b_ref, out_ref, *,
                  seq_len, flat_out):
    """One grid step processes bt batch elements.

    en_ref : (bt*S, H)    flattened encoder states
    de_ref : (bt*S, D2)   flattened decoder states
    wen_ref: (H,  Hr+1)   [W1^T@u1 | W1^T@u2]
    wde_ref: (D2, Hr+1)   [W2^T    | W2^T@u2]
    b_ref  : (1, 1)       scalar bias (SMEM)
    out_ref: (bt, S*S) if flat_out else (bt, S, S)
    """
    bt = out_ref.shape[0]
    s = seq_len
    hr1 = wen_ref.shape[1]                         # Hr + 1

    # Two flat MXU matmuls over bt*S rows:
    #   a_pen[r] = [ we[r]@u1 | we[r]@u2 ]
    #   wd_p [r] = [ wd[r]    | wd[r]@u2 ]
    a_pen = jnp.dot(en_ref[...], wen_ref[...], preferred_element_type=jnp.float32)
    wd_p = jnp.dot(de_ref[...], wde_ref[...], preferred_element_type=jnp.float32)

    # Lane mask selecting the augmentation column (replaces v2's two lane-dim
    # concatenations: no relayout copies, no extra intermediate buffers).
    col = jax.lax.broadcasted_iota(jnp.int32, a_pen.shape, 1)
    is_aug = col == (hr1 - 1)

    #   lhs[r] = [ wd[r]     , 1                          ]
    #   rhs[r] = [ we[r]@u1  , we[r]@u2 + wd[r]@u2 + bias ]
    lhs = jnp.where(is_aug, 1.0, wd_p)
    rhs = a_pen + jnp.where(is_aug, wd_p + b_ref[0, 0], 0.0)

    # out[b,i,j] = lhs[b,i] . rhs[b,j]
    #            = wd[b,i].(we[b,j]@u1) + (we[b,j]+wd[b,j])@u2 + bias
    res = jnp.einsum(
        "bik,bjk->bij",
        lhs.reshape(bt, s, hr1),
        rhs.reshape(bt, s, hr1),
        preferred_element_type=jnp.float32,
    )
    if flat_out:
        res = res.reshape(bt, s * s)               # lane-dense store layout
    out_ref[...] = res.astype(out_ref.dtype)


def _vmem_capacity_bytes():
    try:
        return int(pltpu.get_tpu_info().vmem_capacity_bytes)
    except Exception:
        return 64 << 20                            # conservative (v7x per-core)


def _round_up(x, m):
    return -(-x // m) * m


def _pick_block_batch(B, S, H, D2, hr1, in_itemsize):
    """Batch elements per grid step: target ~1024 flattened rows, bounded by a
    generation-aware VMEM budget (lane/sublane padding included), bt either a
    multiple of 8 or equal to B (Pallas (8,128) block rule), and >= 2 grid
    steps when the batch allows (v7x has 2 TensorCores)."""
    lanes = lambda n: _round_up(n, 128)
    subl = lambda n: _round_up(n, 8)

    def est_bytes(bt):
        rows = subl(bt * S)
        en_b = 2 * rows * lanes(H) * in_itemsize            # double-buffered input
        de_b = 2 * rows * lanes(D2) * in_itemsize
        out_b = 2 * max(subl(bt) * lanes(S * S),             # flat layout
                        bt * subl(S) * lanes(S)) * 4         # fallback 3-D layout
        mid = 5 * rows * lanes(hr1) * 4                       # a_pen/wd_p/lhs/rhs/...
        mid += 2 * bt * subl(S) * lanes(S) * 4                # einsum result (+copy)
        return en_b + de_b + out_b + mid

    cap = _vmem_capacity_bytes()
    budget = min(cap // 2, 24 << 20)

    bt = max(8, (1024 // max(S, 1)) // 8 * 8)                 # ~1024 rows / step
    while bt > 8 and est_bytes(bt) > budget:
        bt -= 8
    # TODO(synk): for very large S (one (S,S) output slab per batch element no
    # longer fits the budget) a second grid axis tiling output rows is needed.

    if bt >= B:
        bt = B                                                # single full block
        if B >= 16:                                           # keep >= 2 grid steps
            half = _round_up(-(-B // 2), 8)
            if half < B:
                bt = half
    return bt, est_bytes(bt)


def bianet_forward(en, de, w1, w2, u1, u2, b):
    """en: (B, S, H), de: (B, S, D2)  ->  (B, S, S) attention weights."""
    B, S, H = en.shape
    D2 = de.shape[-1]
    Hr = w1.shape[0]

    # Fold the chained projections into the Linear weights (tiny, done once by
    # XLA outside the kernel):
    #   W_en = [W1^T@u1 | W1^T@u2]   (H,  Hr+1)
    #   W_de = [W2^T    | W2^T@u2]   (D2, Hr+1)
    hi = jax.lax.Precision.HIGHEST
    w1t = jnp.transpose(w1).astype(jnp.float32)
    w2t = jnp.transpose(w2).astype(jnp.float32)
    u1f = u1.astype(jnp.float32)
    u2f = u2.astype(jnp.float32)
    w_en = jnp.concatenate(
        [jnp.dot(w1t, u1f, precision=hi), jnp.dot(w1t, u2f, precision=hi)], axis=1)
    w_de = jnp.concatenate([w2t, jnp.dot(w2t, u2f, precision=hi)], axis=1)
    bias = jnp.asarray(b, jnp.float32).reshape(1, 1)

    in_itemsize = jnp.dtype(en.dtype).itemsize
    bt, est = _pick_block_batch(B, S, H, D2, Hr + 1, in_itemsize)
    rows = bt * S
    grid = pl.cdiv(B, bt)                  # partial edge block handled by masking

    cap = _vmem_capacity_bytes()
    vmem_limit = int(min(cap, max(2 * est, 32 << 20)))

    # Inputs at native dtype (no f32 up-cast copy); flatten batch*seq rows.
    en_flat = en.reshape(B * S, H)
    de_flat = de.reshape(B * S, D2)

    def call(flat_out):
        if flat_out:
            out_shape = jax.ShapeDtypeStruct((B, S * S), jnp.float32)
            out_spec = pl.BlockSpec((bt, S * S), lambda i: (i, 0))
        else:
            out_shape = jax.ShapeDtypeStruct((B, S, S), jnp.float32)
            out_spec = pl.BlockSpec((bt, S, S), lambda i: (i, 0, 0))
        return pl.pallas_call(
            functools.partial(bianet_kernel, seq_len=S, flat_out=flat_out),
            out_shape=out_shape,
            grid_spec=pltpu.PrefetchScalarGridSpec(
                num_scalar_prefetch=0,
                grid=(grid,),
                in_specs=[
                    pl.BlockSpec((rows, H), lambda i: (i, 0)),
                    pl.BlockSpec((rows, D2), lambda i: (i, 0)),
                    pl.BlockSpec(w_en.shape, lambda i: (0, 0)),
                    pl.BlockSpec(w_de.shape, lambda i: (0, 0)),
                    pl.BlockSpec((1, 1), lambda i: (0, 0),
                                 memory_space=pltpu.MemorySpace.SMEM),
                ],
                out_specs=out_spec,
            ),
            compiler_params=pltpu.CompilerParams(
                dimension_semantics=("parallel",),
                vmem_limit_bytes=vmem_limit,
            ),
        )(en_flat, de_flat, w_en, w_de, bias)

    if S < 128:
        # Lane-dense flattened output (the big measured lever for small S).
        try:
            out = jax.block_until_ready(call(True))
            return out.reshape(B, S, S)
        except Exception:
            # Mosaic could not lower the in-kernel (bt,S,S)->(bt,S*S) flatten
            # on this toolchain; fall back to the known-good 3-D block layout.
            pass
    return call(False)


def bianet_reference(en, de, w1, w2, u1, u2, b):
    we = en @ w1.T
    wd = de @ w2.T
    part_a = jnp.swapaxes(jnp.einsum("bsh,hk,btk->bst", we, u1, wd), 1, 2)
    part_b = ((we + wd) @ u2)[..., 0][:, None, :]
    return part_a + part_b + jnp.reshape(b, (1, 1, 1))


def xavier_normal(key, shape):
    fan_out, fan_in = shape[0], shape[1]
    std = (2.0 / (fan_in + fan_out)) ** 0.5
    return std * jax.random.normal(key, shape, jnp.float32)


if __name__ == "__main__":
    key = jax.random.PRNGKey(0)
    k_en, k_de, k_w1, k_w2, k_u1, k_u2, k_b = jax.random.split(key, 7)

    B, S = 32, 8
    en = jax.random.normal(k_en, (B, S, HIDDEN_SIZE), jnp.float32)
    de = jax.random.normal(k_de, (B, S, RNN_HIDDEN), jnp.float32)

    # Parameters (deterministic init; shapes match the PyTorch module).
    w1 = xavier_normal(k_w1, (RNN_HIDDEN, HIDDEN_SIZE))   # nnW1.weight (out, in)
    w2 = xavier_normal(k_w2, (RNN_HIDDEN, RNN_HIDDEN))    # nnW2.weight (out, in)
    u1 = xavier_normal(k_u1, (RNN_HIDDEN, RNN_HIDDEN))
    u2 = xavier_normal(k_u2, (RNN_HIDDEN, 1))
    b = xavier_normal(k_b, (1, 1)).reshape(1, 1, 1)

    out = jax.block_until_ready(bianet_forward(en, de, w1, w2, u1, u2, b))
    ref = bianet_reference(en, de, w1, w2, u1, u2, b)
    assert out.shape == (B, S, S)
    assert jnp.allclose(out, ref, atol=5e-4, rtol=5e-4), \
        float(jnp.max(jnp.abs(out - ref)))

    # Exercise the partial edge block (B not a multiple of the batch tile),
    # which replaced the wrapper-side zero-pad copy.
    B2 = 20
    out2 = jax.block_until_ready(
        bianet_forward(en[:B2], de[:B2], w1, w2, u1, u2, b))
    ref2 = bianet_reference(en[:B2], de[:B2], w1, w2, u1, u2, b)
    assert out2.shape == (B2, S, S)
    assert jnp.allclose(out2, ref2, atol=5e-4, rtol=5e-4), \
        float(jnp.max(jnp.abs(out2 - ref2)))

    print("KERNEL_OK")
</pallas_src>

<mosaic_0001>
module attributes {stable_mosaic.version = 11 : i64} {
  func.func @bianet_kernel(%arg0: i32, %arg1: memref<128x64xf32, #tpu.memory_space<vmem>>, %arg2: memref<128x32xf32, #tpu.memory_space<vmem>>, %arg3: memref<64x33xf32, #tpu.memory_space<vmem>>, %arg4: memref<32x33xf32, #tpu.memory_space<vmem>>, %arg5: memref<1x1xf32, #tpu.memory_space<smem>>, %arg6: memref<16x64xf32, #tpu.memory_space<vmem>>) attributes {dimension_semantics = [#tpu.dimension_semantics<parallel>], iteration_bounds = array<i64: 2>, scalar_prefetch = 0 : i64, scratch_operands = 0 : i64, tpu.core_type = #tpu.core_type<tc>, window_params = [{transform_indices = @transform_0, window_bounds = array<i64: 128, 64>}, {transform_indices = @transform_1, window_bounds = array<i64: 128, 32>}, {pipeline_mode = #tpu.pipeline_mode<synchronous>, transform_indices = @transform_2, window_bounds = array<i64: 64, 33>}, {pipeline_mode = #tpu.pipeline_mode<synchronous>, transform_indices = @transform_3, window_bounds = array<i64: 32, 33>}, {transform_indices = @transform_4, window_bounds = array<i64: 1, 1>}, {transform_indices = @transform_5, window_bounds = array<i64: 16, 64>}]} {
    %c0 = arith.constant 0 : index
    %c0_0 = arith.constant 0 : index
    %0 = vector.load %arg1[%c0, %c0_0] : memref<128x64xf32, #tpu.memory_space<vmem>>, vector<128x64xf32>
    %c0_1 = arith.constant 0 : index
    %c0_2 = arith.constant 0 : index
    %1 = vector.load %arg3[%c0_1, %c0_2] : memref<64x33xf32, #tpu.memory_space<vmem>>, vector<64x33xf32>
    %cst = arith.constant dense<0.000000e+00> : vector<128x33xf32>
    %2 = tpu.matmul %0, %1, %cst {dimension_numbers = #tpu.dot_dimension_numbers<[1], [0], [0], [1], [0, 0, 1, 1], [], []>} : vector<128x64xf32>, vector<64x33xf32>, vector<128x33xf32> -> vector<128x33xf32>
    %c0_3 = arith.constant 0 : index
    %c0_4 = arith.constant 0 : index
    %3 = vector.load %arg2[%c0_3, %c0_4] : memref<128x32xf32, #tpu.memory_space<vmem>>, vector<128x32xf32>
    %c0_5 = arith.constant 0 : index
    %c0_6 = arith.constant 0 : index
    %4 = vector.load %arg4[%c0_5, %c0_6] : memref<32x33xf32, #tpu.memory_space<vmem>>, vector<32x33xf32>
    %cst_7 = arith.constant dense<0.000000e+00> : vector<128x33xf32>
    %5 = tpu.matmul %3, %4, %cst_7 {dimension_numbers = #tpu.dot_dimension_numbers<[1], [0], [0], [1], [0, 0, 1, 1], [], []>} : vector<128x32xf32>, vector<32x33xf32>, vector<128x33xf32> -> vector<128x33xf32>
    %6 = tpu.iota {dimensions = array<i32: 1>} : vector<128x33xi32>
    %c32_i32 = arith.constant 32 : i32
    %7 = vector.broadcast %c32_i32 : i32 to vector<128x33xi32>
    %8 = arith.cmpi eq, %6, %7 : vector<128x33xi32>
    %cst_8 = arith.constant 1.000000e+00 : f32
    %9 = vector.broadcast %cst_8 : f32 to vector<128x33xf32>
    %10 = arith.select %8, %9, %5 : vector<128x33xi1>, vector<128x33xf32>
    %c0_9 = arith.constant 0 : index
    %c0_10 = arith.constant 0 : index
    %11 = memref.load %arg5[%c0_9, %c0_10] : memref<1x1xf32, #tpu.memory_space<smem>>
    %12 = vector.broadcast %11 : f32 to vector<128x33xf32>
    %13 = arith.addf %5, %12 : vector<128x33xf32>
    %cst_11 = arith.constant 0.000000e+00 : f32
    %14 = vector.broadcast %cst_11 : f32 to vector<128x33xf32>
    %15 = arith.select %8, %13, %14 : vector<128x33xi1>, vector<128x33xf32>
    %16 = arith.addf %2, %15 : vector<128x33xf32>
    %17 = vector.shape_cast %10 : vector<128x33xf32> to vector<16x8x33xf32>
    %18 = vector.shape_cast %16 : vector<128x33xf32> to vector<16x8x33xf32>
    "tpu.trace_start"() <{level = 10 : i32, message = "bik,bjk->bij"}> : () -> ()
    %cst_12 = arith.constant dense<0.000000e+00> : vector<16x8x8xf32>
    %19 = tpu.matmul %17, %18, %cst_12 {dimension_numbers = #tpu.dot_dimension_numbers<[2], [2], [1], [1], [0, 0, 0, 1, 1, 1], [0], [0]>} : vector<16x8x33xf32>, vector<16x8x33xf32>, vector<16x8x8xf32> -> vector<16x8x8xf32>
    "tpu.trace_stop"() : () -> ()
    %20 = vector.shape_cast %19 : vector<16x8x8xf32> to vector<16x64xf32>
    %c0_13 = arith.constant 0 : index
    %c0_14 = arith.constant 0 : index
    %21 = vector.load %arg6[%c0_13, %c0_14] : memref<16x64xf32, #tpu.memory_space<vmem>>, vector<16x64xf32>
    tpu.vector_store %arg6[%c0_13, %c0_14], %20 {strides = array<i32>} : memref<16x64xf32, #tpu.memory_space<vmem>>, vector<16x64xf32>,
    return
  }
  func.func @transform_0(%arg0: i32) -> (i32, i32) {
    %c0_i32 = arith.constant 0 : i32
    %c0_i32_0 = arith.constant 0 : i32
    return %arg0, %c0_i32 : i32, i32
  }
  func.func @transform_1(%arg0: i32) -> (i32, i32) {
    %c0_i32 = arith.constant 0 : i32
    %c0_i32_0 = arith.constant 0 : i32
    return %arg0, %c0_i32 : i32, i32
  }
  func.func @transform_2(%arg0: i32) -> (i32, i32) {
    %c0_i32 = arith.constant 0 : i32
    %c0_i32_0 = arith.constant 0 : i32
    %c0_i32_1 = arith.constant 0 : i32
    return %c0_i32, %c0_i32_0 : i32, i32
  }
  func.func @transform_3(%arg0: i32) -> (i32, i32) {
    %c0_i32 = arith.constant 0 : i32
    %c0_i32_0 = arith.constant 0 : i32
    %c0_i32_1 = arith.constant 0 : i32
    return %c0_i32, %c0_i32_0 : i32, i32
  }
  func.func @transform_4(%arg0: i32) -> (i32, i32) {
    %c0_i32 = arith.constant 0 : i32
    %c0_i32_0 = arith.constant 0 : i32
    %c0_i32_1 = arith.constant 0 : i32
    return %c0_i32, %c0_i32_0 : i32, i32
  }
  func.func @transform_5(%arg0: i32) -> (i32, i32) {
    %c0_i32 = arith.constant 0 : i32
    %c0_i32_0 = arith.constant 0 : i32
    return %arg0, %c0_i32 : i32, i32
  }
}

module attributes {stable_mosaic.version = 11 : i64} {
  func.func @bianet_kernel(%arg0: i32, %arg1: memref<128x64xf32, #tpu.memory_space<vmem>>, %arg2: memref<128x32xf32, #tpu.memory_space<vmem>>, %arg3: memref<64x33xf32, #tpu.memory_space<vmem>>, %arg4: memref<32x33xf32, #tpu.memory_space<vmem>>, %arg5: memref<1x1xf32, #tpu.memory_space<smem>>, %arg6: memref<16x8x8xf32, #tpu.memory_space<vmem>>) attributes {dimension_semantics = [#tpu.dimension_semantics<parallel>], iteration_bounds = array<i64: 2>, scalar_prefetch = 0 : i64, scratch_operands = 0 : i64, tpu.core_type = #tpu.core_type<tc>, window_params = [{transform_indices = @transform_0, window_bounds = array<i64: 128, 64>}, {transform_indices = @transform_1, window_bounds = array<i64: 128, 32>}, {pipeline_mode = #tpu.pipeline_mode<synchronous>, transform_indices = @transform_2, window_bounds = array<i64: 64, 33>}, {pipeline_mode = #tpu.pipeline_mode<synchronous>, transform_indices = @transform_3, window_bounds = array<i64: 32, 33>}, {transform_indices = @transform_4, window_bounds = array<i64: 1, 1>}, {transform_indices = @transform_5, window_bounds = array<i64: 16, 8, 8>}]} {
    %c0 = arith.constant 0 : index
    %c0_0 = arith.constant 0 : index
    %0 = vector.load %arg1[%c0, %c0_0] : memref<128x64xf32, #tpu.memory_space<vmem>>, vector<128x64xf32>
    %c0_1 = arith.constant 0 : index
    %c0_2 = arith.constant 0 : index
    %1 = vector.load %arg3[%c0_1, %c0_2] : memref<64x33xf32, #tpu.memory_space<vmem>>, vector<64x33xf32>
    %cst = arith.constant dense<0.000000e+00> : vector<128x33xf32>
    %2 = tpu.matmul %0, %1, %cst {dimension_numbers = #tpu.dot_dimension_numbers<[1], [0], [0], [1], [0, 0, 1, 1], [], []>} : vector<128x64xf32>, vector<64x33xf32>, vector<128x33xf32> -> vector<128x33xf32>
    %c0_3 = arith.constant 0 : index
    %c0_4 = arith.constant 0 : index
    %3 = vector.load %arg2[%c0_3, %c0_4] : memref<128x32xf32, #tpu.memory_space<vmem>>, vector<128x32xf32>
    %c0_5 = arith.constant 0 : index
    %c0_6 = arith.constant 0 : index
    %4 = vector.load %arg4[%c0_5, %c0_6] : memref<32x33xf32, #tpu.memory_space<vmem>>, vector<32x33xf32>
    %cst_7 = arith.constant dense<0.000000e+00> : vector<128x33xf32>
    %5 = tpu.matmul %3, %4, %cst_7 {dimension_numbers = #tpu.dot_dimension_numbers<[1], [0], [0], [1], [0, 0, 1, 1], [], []>} : vector<128x32xf32>, vector<32x33xf32>, vector<128x33xf32> -> vector<128x33xf32>
    %6 = tpu.iota {dimensions = array<i32: 1>} : vector<128x33xi32>
    %c32_i32 = arith.constant 32 : i32
    %7 = vector.broadcast %c32_i32 : i32 to vector<128x33xi32>
    %8 = arith.cmpi eq, %6, %7 : vector<128x33xi32>
    %cst_8 = arith.constant 1.000000e+00 : f32
    %9 = vector.broadcast %cst_8 : f32 to vector<128x33xf32>
    %10 = arith.select %8, %9, %5 : vector<128x33xi1>, vector<128x33xf32>
    %c0_9 = arith.constant 0 : index
    %c0_10 = arith.constant 0 : index
    %11 = memref.load %arg5[%c0_9, %c0_10] : memref<1x1xf32, #tpu.memory_space<smem>>
    %12 = vector.broadcast %11 : f32 to vector<128x33xf32>
    %13 = arith.addf %5, %12 : vector<128x33xf32>
    %cst_11 = arith.constant 0.000000e+00 : f32
    %14 = vector.broadcast %cst_11 : f32 to vector<128x33xf32>
    %15 = arith.select %8, %13, %14 : vector<128x33xi1>, vector<128x33xf32>
    %16 = arith.addf %2, %15 : vector<128x33xf32>
    %17 = vector.shape_cast %10 : vector<128x33xf32> to vector<16x8x33xf32>
    %18 = vector.shape_cast %16 : vector<128x33xf32> to vector<16x8x33xf32>
    "tpu.trace_start"() <{level = 10 : i32, message = "bik,bjk->bij"}> : () -> ()
    %cst_12 = arith.constant dense<0.000000e+00> : vector<16x8x8xf32>
    %19 = tpu.matmul %17, %18, %cst_12 {dimension_numbers = #tpu.dot_dimension_numbers<[2], [2], [1], [1], [0, 0, 0, 1, 1, 1], [0], [0]>} : vector<16x8x33xf32>, vector<16x8x33xf32>, vector<16x8x8xf32> -> vector<16x8x8xf32>
    "tpu.trace_stop"() : () -> ()
    %c0_13 = arith.constant 0 : index
    %c0_14 = arith.constant 0 : index
    %c0_15 = arith.constant 0 : index
    %20 = vector.load %arg6[%c0_13, %c0_14, %c0_15] : memref<16x8x8xf32, #tpu.memory_space<vmem>>, vector<16x8x8xf32>
    tpu.vector_store %arg6[%c0_13, %c0_14, %c0_15], %19 {strides = array<i32>} : memref<16x8x8xf32, #tpu.memory_space<vmem>>, vector<16x8x8xf32>,
    return
  }
  func.func @transform_0(%arg0: i32) -> (i32, i32) {
    %c0_i32 = arith.constant 0 : i32
    %c0_i32_0 = arith.constant 0 : i32
    return %arg0, %c0_i32 : i32, i32
  }
  func.func @transform_1(%arg0: i32) -> (i32, i32) {
    %c0_i32 = arith.constant 0 : i32
    %c0_i32_0 = arith.constant 0 : i32
    return %arg0, %c0_i32 : i32, i32
  }
  func.func @transform_2(%arg0: i32) -> (i32, i32) {
    %c0_i32 = arith.constant 0 : i32
    %c0_i32_0 = arith.constant 0 : i32
    %c0_i32_1 = arith.constant 0 : i32
    return %c0_i32, %c0_i32_0 : i32, i32
  }
  func.func @transform_3(%arg0: i32) -> (i32, i32) {
    %c0_i32 = arith.constant 0 : i32
    %c0_i32_0 = arith.constant 0 : i32
    %c0_i32_1 = arith.constant 0 : i32
    return %c0_i32, %c0_i32_0 : i32, i32
  }
  func.func @transform_4(%arg0: i32) -> (i32, i32) {
    %c0_i32 = arith.constant 0 : i32
    %c0_i32_0 = arith.constant 0 : i32
    %c0_i32_1 = arith.constant 0 : i32
    return %c0_i32, %c0_i32_0 : i32, i32
  }
  func.func @transform_5(%arg0: i32) -> (i32, i32, i32) {
    %c0_i32 = arith.constant 0 : i32
    %c0_i32_0 = arith.constant 0 : i32
    %c0_i32_1 = arith.constant 0 : i32
    return %arg0, %c0_i32, %c0_i32_0 : i32, i32, i32
  }
}

</mosaic_0001>

<llo_original>
// kernel: tpu_custom_call.1
$region0: #{tpu_custom_call.1}
  #allocation0 [shape = 'u32[]', space=smem, size = 0x4, offset = 0x4, fixed_abs, tag = 'smem constant byte address 0x4 - core index']
  #allocation1 [shape = 'u32[72,128]{1,0:T(1,128)}', space=vmem, size = 0x9000, scoped, tag = 'internal scratch']
  #allocation2 [shape = 'f32[1,1]{1,0:T(1,128)S(6)}', space=smem, size = 0x200, scoped, tag = 'scoped memory for tpu_custom_call.1']
  %s0 = inlined_call_operand.vmem [shape: f32[256,64], index: 0, kind: input, shape index: {}]
  %s1 = inlined_call_operand.vmem [shape: f32[256,32], index: 1, kind: input, shape index: {}]
  %s2 = inlined_call_operand.vmem [shape: f32[64,33], index: 2, kind: input, shape index: {}]
  %s3 = inlined_call_operand.vmem [shape: f32[32,33], index: 3, kind: input, shape index: {}]
  %s4 = inlined_call_operand.<no memory space> [shape: f32[1,1], index: 4, kind: input, shape index: {}]
  %s5 = inlined_call_operand.hbm [shape: f32[32,64], index: 5, kind: output, shape index: {}]
  %s6 = sld [smem:[#allocation0]]
  $region53: #{tpu_custom_call.1} parent=0
    _
  %s8 = ssub.s32 1, %s6
  %s9 = scalar_select 0, %s8, %s6
  %10 = sst [smem:[#allocation2]] %s4
  $region1: #{tpu_custom_call.1} parent=0
    #allocation3 [shape = 'u8[16384]{0}', space=vmem, size = 0x4000, scoped, tag = 'output window, operand 0']
    #allocation4 [shape = 's32[2]{0}', space=sflag, size = 0x8, scoped, tag = 'scoped memory for tpu_custom_call.1']
    %11 = vsyncpa [#allocation4], 0
    %s12 = scalar_lea.sflag [#allocation4], 1
    %13 = vsyncpa %s12, 0
    loop: start=0, step=1, limit=4
    $region2: #{tpu_custom_call.1} parent=1 // loop_pre_header
      _
    $region3: #{tpu_custom_call.1} parent=1 // loop_header
      %s15 = sphi 0, %s19
      %p16 = scmp.ge.s32.totalorder %s15, 4
      %s25 = sphi 0, %s27
      %s28 = sphi 0, %s25
      %s29 = sphi 0, %s28
      %s45 = sphi 0, %s29
      %s51 = sphi 0, %s53
      %s54 = sphi 0, %s51
      %s55 = sphi 0, %s54
      %s71 = sphi 0, %s55
      %s75 = sphi 0, %s75
      %s77 = sphi 0, %s75
      %s78 = sphi 0, %s77
      %s92 = sphi 0, %s78
      %s96 = sphi 0, %s96
      %s98 = sphi 0, %s96
      %s99 = sphi 0, %s98
      %s113 = sphi 0, %s99
      %s117 = sphi 0, %s117
      %s119 = sphi 0, %s117
      %s120 = sphi 0, %s119
      %s134 = sphi 0, %s120
      %s140 = sphi 0, %s142
      %s143 = sphi 0, %s140
      %s144 = sphi 0, %s143
      %s160 = sphi 0, %s144
    $region4: #{tpu_custom_call.1} parent=1 // loop_header_branch
      %18 = sbr.rel (%p16) target = $region8
    $region5: #{tpu_custom_call.1} parent=1 // loop_body
      %s20 = ssub.s32 %s15, 1
      %s21 = ssub.s32 %s15, 2
      %s22 = sadd.s32 %s15, 1
      %s23 = ssub.s32 %s15, %s22
      %p24 = scmp.eq.s32.totalorder %s23, 0
      %s26 = sadd.s32 %s25, 1
      %s27 = scalar_select %p24, %s25, %s26
      %p30 = pneg %p24
      %p31 = scmp.eq.s32.totalorder %s15, 1
      %p32 = por %p30, %p31
      %p33 = scmp.ne.s32.totalorder %s25, %s28
      %p34 = scmp.eq.s32.totalorder %s15, 0
      %p35 = por %p33, %p34
      %p36 = scmp.ne.s32.totalorder %s25, %s28
      %p37 = scmp.eq.s32.totalorder %s20, 1
      %p38 = por %p36, %p37
      %p39 = scmp.ne.s32.totalorder %s28, %s29
      %p40 = scmp.eq.s32.totalorder %s20, 0
      %p41 = por %p39, %p40
      %p42 = scmp.ne.s32.totalorder %s28, %s29
      %p43 = scmp.eq.s32.totalorder %s21, 1
      %p44 = por %p42, %p43
      %p46 = scmp.ne.s32.totalorder %s29, %s45
      %p47 = scmp.eq.s32.totalorder %s21, 0
      %p48 = por %p46, %p47
      %s49 = ssub.s32 %s15, %s22
      %p50 = scmp.eq.s32.totalorder %s49, 0
      %s52 = sadd.s32 %s51, 1
      %s53 = scalar_select %p50, %s51, %s52
      %p56 = pneg %p50
      %p57 = scmp.eq.s32.totalorder %s15, 1
      %p58 = por %p56, %p57
      %p59 = scmp.ne.s32.totalorder %s51, %s54
      %p60 = scmp.eq.s32.totalorder %s15, 0
      %p61 = por %p59, %p60
      %p62 = scmp.ne.s32.totalorder %s51, %s54
      %p63 = scmp.eq.s32.totalorder %s20, 1
      %p64 = por %p62, %p63
      %p65 = scmp.ne.s32.totalorder %s54, %s55
      %p66 = scmp.eq.s32.totalorder %s20, 0
      %p67 = por %p65, %p66
      %p68 = scmp.ne.s32.totalorder %s54, %s55
      %p69 = scmp.eq.s32.totalorder %s21, 1
      %p70 = por %p68, %p69
      %p72 = scmp.ne.s32.totalorder %s55, %s71
      %p73 = scmp.eq.s32.totalorder %s21, 0
      %p74 = por %p72, %p73
      %s76 = sadd.s32 %s75, 1
      %p79 = scmp.eq.s32.totalorder %s15, 1
      %p80 = scmp.ne.s32.totalorder %s75, %s77
      %p81 = scmp.eq.s32.totalorder %s15, 0
      %p82 = por %p80, %p81
      %p83 = scmp.ne.s32.totalorder %s75, %s77
      %p84 = scmp.eq.s32.totalorder %s20, 1
      %p85 = por %p83, %p84
      %p86 = scmp.ne.s32.totalorder %s77, %s78
      %p87 = scmp.eq.s32.totalorder %s20, 0
      %p88 = por %p86, %p87
      %p89 = scmp.ne.s32.totalorder %s77, %s78
      %p90 = scmp.eq.s32.totalorder %s21, 1
      %p91 = por %p89, %p90
      %p93 = scmp.ne.s32.totalorder %s78, %s92
      %p94 = scmp.eq.s32.totalorder %s21, 0
      %p95 = por %p93, %p94
      %s97 = sadd.s32 %s96, 1
      %p100 = scmp.eq.s32.totalorder %s15, 1
      %p101 = scmp.ne.s32.totalorder %s96, %s98
      %p102 = scmp.eq.s32.totalorder %s15, 0
      %p103 = por %p101, %p102
      %p104 = scmp.ne.s32.totalorder %s96, %s98
      %p105 = scmp.eq.s32.totalorder %s20, 1
      %p106 = por %p104, %p105
      %p107 = scmp.ne.s32.totalorder %s98, %s99
      %p108 = scmp.eq.s32.totalorder %s20, 0
      %p109 = por %p107, %p108
      %p110 = scmp.ne.s32.totalorder %s98, %s99
      %p111 = scmp.eq.s32.totalorder %s21, 1
      %p112 = por %p110, %p111
      %p114 = scmp.ne.s32.totalorder %s99, %s113
      %p115 = scmp.eq.s32.totalorder %s21, 0
      %p116 = por %p114, %p115
      %s118 = sadd.s32 %s117, 1
      %p121 = scmp.eq.s32.totalorder %s15, 1
      %p122 = scmp.ne.s32.totalorder %s117, %s119
      %p123 = scmp.eq.s32.totalorder %s15, 0
      %p124 = por %p122, %p123
      %p125 = scmp.ne.s32.totalorder %s117, %s119
      %p126 = scmp.eq.s32.totalorder %s20, 1
      %p127 = por %p125, %p126
      %p128 = scmp.ne.s32.totalorder %s119, %s120
      %p129 = scmp.eq.s32.totalorder %s20, 0
      %p130 = por %p128, %p129
      %p131 = scmp.ne.s32.totalorder %s119, %s120
      %p132 = scmp.eq.s32.totalorder %s21, 1
      %p133 = por %p131, %p132
      %p135 = scmp.ne.s32.totalorder %s120, %s134
      %p136 = scmp.eq.s32.totalorder %s21, 0
      %p137 = por %p135, %p136
      %s138 = ssub.s32 %s15, %s22
      %p139 = scmp.eq.s32.totalorder %s138, 0
      %s141 = sadd.s32 %s140, 1
      %s142 = scalar_select %p139, %s140, %s141
      %p145 = pneg %p139
      %p146 = scmp.eq.s32.totalorder %s15, 1
      %p147 = por %p145, %p146
      %p148 = scmp.ne.s32.totalorder %s140, %s143
      %p149 = scmp.eq.s32.totalorder %s15, 0
      %p150 = por %p148, %p149
      %p151 = scmp.ne.s32.totalorder %s140, %s143
      %p152 = scmp.eq.s32.totalorder %s20, 1
      %p153 = por %p151, %p152
      %p154 = scmp.ne.s32.totalorder %s143, %s144
      %p155 = scmp.eq.s32.totalorder %s20, 0
      %p156 = por %p154, %p155
      %p157 = scmp.ne.s32.totalorder %s143, %s144
      %p158 = scmp.eq.s32.totalorder %s21, 1
      %p159 = por %p157, %p158
      %p161 = scmp.ne.s32.totalorder %s144, %s160
      %p162 = scmp.eq.s32.totalorder %s21, 0
      %p163 = por %p161, %p162
      %p164 = scmp.le.s32.totalorder 1, %s15
      %p165 = scmp.lt.s32.totalorder %s15, 3
      %p166 = pnand %p164, %p165
      %p167 = pneg %p166
      // Predicated region
      $region9: #{tpu_custom_call.1} parent=5 // pred_check
        _
      $region10: #{tpu_custom_call.1} parent=5 // pred_check_branch
        %169 = sbr.rel (%p166) target = $region12
      $region11: #{tpu_custom_call.1} parent=5 // pred_region
        %s170 = ssub.s32 %s15, 1
        // Predicated region
        $region13: #{tpu_custom_call.1} parent=11 // pred_check
          %p171 = pneg %p88
        $region14: #{tpu_custom_call.1} parent=11 // pred_check_branch
          %173 = sbr.rel (%p171) target = $region16
        $region15: #{tpu_custom_call.1} parent=11 // pred_region
          _
        $region16: #{tpu_custom_call.1} parent=11 // pred_fallthru
          _
        // Predicated region
        $region17: #{tpu_custom_call.1} parent=11 // pred_check
          %p174 = pneg %p109
        $region18: #{tpu_custom_call.1} parent=11 // pred_check_branch
          %176 = sbr.rel (%p174) target = $region20
        $region19: #{tpu_custom_call.1} parent=11 // pred_region
          _
        $region20: #{tpu_custom_call.1} parent=11 // pred_fallthru
          _
        // Predicated region
        $region21: #{tpu_custom_call.1} parent=11 // pred_check
          %p177 = pneg %p130
        $region22: #{tpu_custom_call.1} parent=11 // pred_check_branch
          %179 = sbr.rel (%p177) target = $region24
        $region23: #{tpu_custom_call.1} parent=11 // pred_region
          _
        $region24: #{tpu_custom_call.1} parent=11 // pred_fallthru
          _
      $region12: #{tpu_custom_call.1} parent=5 // pred_fallthru
        _
      %p180 = scmp.lt.s32.totalorder %s15, 2
      // Predicated region
      $region25: #{tpu_custom_call.1} parent=5 // pred_check
        %p181 = pneg %p180
      $region26: #{tpu_custom_call.1} parent=5 // pred_check_branch
        %183 = sbr.rel (%p181) target = $region28
      $region27: #{tpu_custom_call.1} parent=5 // pred_region
        // Predicated region
        $region29: #{tpu_custom_call.1} parent=27 // pred_check
          %p184 = pneg %p35
        $region30: #{tpu_custom_call.1} parent=27 // pred_check_branch
          %186 = sbr.rel (%p184) target = $region32
        $region31: #{tpu_custom_call.1} parent=27 // pred_region
          %s187 = smul.u32 16, %s15
          %p188 = scmp.lt.s32.totalorder %s187, 31
          %s189 = scalar_select %p188, %s187, 31
          %s190 = smul.addr %s189, 8
          %s191 = scalar_lea.vmem %s0, %s190
          %s192 = smul.u32 16, %s15
        $region32: #{tpu_custom_call.1} parent=27 // pred_fallthru
          _
        // Predicated region
        $region33: #{tpu_custom_call.1} parent=27 // pred_check
          %p193 = pneg %p61
        $region34: #{tpu_custom_call.1} parent=27 // pred_check_branch
          %195 = sbr.rel (%p193) target = $region36
        $region35: #{tpu_custom_call.1} parent=27 // pred_region
          %s196 = smul.u32 16, %s15
          %p197 = scmp.lt.s32.totalorder %s196, 31
          %s198 = scalar_select %p197, %s196, 31
          %s199 = smul.addr %s198, 8
          %s200 = scalar_lea.vmem %s1, %s199
          %s201 = smul.u32 16, %s15
        $region36: #{tpu_custom_call.1} parent=27 // pred_fallthru
          _
      $region28: #{tpu_custom_call.1} parent=5 // pred_fallthru
        _
      %p202 = scmp.le.s32.totalorder 1, %s15
      %p203 = scmp.lt.s32.totalorder %s15, 3
      %p204 = pnand %p202, %p203
      %p205 = pneg %p204
      // Predicated region
      $region37: #{tpu_custom_call.1} parent=5 // pred_check
        _
      $region38: #{tpu_custom_call.1} parent=5 // pred_check_branch
        %207 = sbr.rel (%p204) target = $region40
      $region39: #{tpu_custom_call.1} parent=5 // pred_region
        %s208 = ssub.s32 %s15, 1
        %s209 = smul.u32 16, %s20
        %p210 = scmp.lt.s32.totalorder %s209, 31
        %s211 = scalar_select %p210, %s209, 31
        %s212 = smul.addr %s211, 8
        %s213 = scalar_lea.vmem %s0, %s212
        %p214 = pneg %p41
        %p215 = pneg %p38
        %s216 = smul.u32 16, %s20
        %p217 = scmp.lt.s32.totalorder %s216, 31
        %s218 = scalar_select %p217, %s216, 31
        %s219 = smul.addr %s218, 8
        %s220 = scalar_lea.vmem %s1, %s219
        %p221 = pneg %p67
        %p222 = pneg %p64
        %p223 = pneg %p88
        %p224 = pneg %p85
        %p225 = pneg %p109
        %p226 = pneg %p106
        %p227 = pneg %p130
        %p228 = pneg %p127
        %p229 = pneg %p156
        %p230 = pneg %p153
        %s231 = sand.u32 %s143, 1
        %s232 = scalar_lea.sflag [#allocation4], %s231
        %s233 = sand.u32 %s143, 1
        %s234 = smul.addr %s233, 16
        %s235 = scalar_lea.vmem [#allocation3], %s234
        %s236 = smul.u32 16, %s20
        %p237 = scmp.lt.s32.totalorder %s236, 31
        %s238 = scalar_select %p237, %s236, 31
        %s239 = smul.addr %s238, 8
        %s240 = scalar_lea.vmem %s0, %s239
        %s241 = smul.u32 16, %s20
        %s242 = smul.u32 16, %s20
        %p243 = scmp.lt.s32.totalorder %s242, 31
        %s244 = scalar_select %p243, %s242, 31
        %s245 = smul.addr %s244, 8
        %s246 = scalar_lea.vmem %s1, %s245
        %s247 = smul.u32 16, %s20
        %s248 = smul.u32 2, %s20
        %v249 = vld [vmem:[%s240] sm:$0xff]
        %v250 = vld [vmem:[%s240 + $0x8] sm:$0xff]
        %v251 = vld [vmem:[%s240 + $0x10] sm:$0xff]
        %v252 = vld [vmem:[%s240 + $0x18] sm:$0xff]
        %v253 = vld [vmem:[%s240 + $0x20] sm:$0xff]
        %v254 = vld [vmem:[%s240 + $0x28] sm:$0xff]
        %v255 = vld [vmem:[%s240 + $0x30] sm:$0xff]
        %v256 = vld [vmem:[%s240 + $0x38] sm:$0xff]
        %v257 = vld [vmem:[%s240 + $0x40] sm:$0xff]
        %v258 = vld [vmem:[%s240 + $0x48] sm:$0xff]
        %v259 = vld [vmem:[%s240 + $0x50] sm:$0xff]
        %v260 = vld [vmem:[%s240 + $0x58] sm:$0xff]
        %v261 = vld [vmem:[%s240 + $0x60] sm:$0xff]
        %v262 = vld [vmem:[%s240 + $0x68] sm:$0xff]
        %v263 = vld [vmem:[%s240 + $0x70] sm:$0xff]
        %v264 = vld [vmem:[%s240 + $0x78] sm:$0xff]
        %v265 = vld [vmem:[%s2] sm:$0xff]
        %v266 = vld [vmem:[%s2 + $0x8] sm:$0xff]
        %v267 = vld [vmem:[%s2 + $0x10] sm:$0xff]
        %v268 = vld [vmem:[%s2 + $0x18] sm:$0xff]
        %v269 = vld [vmem:[%s2 + $0x20] sm:$0xff]
        %v270 = vld [vmem:[%s2 + $0x28] sm:$0xff]
        %v271 = vld [vmem:[%s2 + $0x30] sm:$0xff]
        %v272 = vld [vmem:[%s2 + $0x38] sm:$0xff]
        %v273 = vld [vmem:[%s246] sm:$0xff]
        %v274 = vld [vmem:[%s246 + $0x8] sm:$0xff]
        %v275 = vld [vmem:[%s246 + $0x10] sm:$0xff]
        %v276 = vld [vmem:[%s246 + $0x18] sm:$0xff]
        %v277 = vld [vmem:[%s246 + $0x20] sm:$0xff]
        %v278 = vld [vmem:[%s246 + $0x28] sm:$0xff]
        %v279 = vld [vmem:[%s246 + $0x30] sm:$0xff]
        %v280 = vld [vmem:[%s246 + $0x38] sm:$0xff]
        %v281 = vld [vmem:[%s246 + $0x40] sm:$0xff]
        %v282 = vld [vmem:[%s246 + $0x48] sm:$0xff]
        %v283 = vld [vmem:[%s246 + $0x50] sm:$0xff]
        %v284 = vld [vmem:[%s246 + $0x58] sm:$0xff]
        %v285 = vld [vmem:[%s246 + $0x60] sm:$0xff]
        %v286 = vld [vmem:[%s246 + $0x68] sm:$0xff]
        %v287 = vld [vmem:[%s246 + $0x70] sm:$0xff]
        %v288 = vld [vmem:[%s246 + $0x78] sm:$0xff]
        %v289 = vld [vmem:[%s3] sm:$0xff]
        %v290 = vld [vmem:[%s3 + $0x8] sm:$0xff]
        %v291 = vld [vmem:[%s3 + $0x10] sm:$0xff]
        %v292 = vld [vmem:[%s3 + $0x18] sm:$0xff]
        %vm293 = vcmask 261120
        %v295 = vsel %vm293, %v273, 0
        %v298 = vsel %vm293, %v274, 0
        %v301 = vsel %vm293, %v275, 0
        %v304 = vsel %vm293, %v276, 0
        %v307 = vsel %vm293, %v277, 0
        %v310 = vsel %vm293, %v278, 0
        %v313 = vsel %vm293, %v279, 0
        %v316 = vsel %vm293, %v280, 0
        %v319 = vsel %vm293, %v281, 0
        %v322 = vsel %vm293, %v282, 0
        %v325 = vsel %vm293, %v283, 0
        %v328 = vsel %vm293, %v284, 0
        %v331 = vsel %vm293, %v285, 0
        %v334 = vsel %vm293, %v286, 0
        %v337 = vsel %vm293, %v287, 0
        %v340 = vsel %vm293, %v288, 0
        %342 = vmatpush.msra.mxu0 0.0
        %343 = vmatpush.msra.mxu0 0.0
        %344 = vmatpush.msra.mxu0 0.0
        %345 = vmatpush.msra.mxu0 0.0
        %346 = vmatpush.msra.mxu0 0.0
        %347 = vmatpush.msra.mxu0 0.0
        %348 = vmatpush.msra.mxu0 0.0
        %349 = vmatpush.msra.mxu0 0.0
        %350 = vmatpush.msra.mxu0 0.0
        %351 = vmatpush.msra.mxu0 0.0
        %352 = vmatpush.msra.mxu0 0.0
        %353 = vmatpush.msra.mxu0 0.0
        %354 = vmatpush.msra.mxu0 %v292
        %355 = vmatpush.msra.mxu0 %v291
        %356 = vmatpush.msra.mxu0 %v290
        %357 = vmatpush.msra.mxu0 %v289
        %358 = vmatmul.f32.gmra.mxu0 %v295
        %v359 = vpop.f32.mrf.mxu0
        %v360 = vadd.f32 0.0, %v359
        %361 = vmatmul.f32.gmra.mxu0 %v298
        %v362 = vpop.f32.mrf.mxu0
        %v363 = vadd.f32 0.0, %v362
        %364 = vmatmul.f32.gmra.mxu0 %v301
        %v365 = vpop.f32.mrf.mxu0
        %v366 = vadd.f32 0.0, %v365
        %367 = vmatmul.f32.gmra.mxu0 %v304
        %v368 = vpop.f32.mrf.mxu0
        %v369 = vadd.f32 0.0, %v368
        %370 = vmatmul.f32.gmra.mxu0 %v307
        %v371 = vpop.f32.mrf.mxu0
        %v372 = vadd.f32 0.0, %v371
        %373 = vmatmul.f32.gmra.mxu0 %v310
        %v374 = vpop.f32.mrf.mxu0
        %v375 = vadd.f32 0.0, %v374
        %376 = vmatmul.f32.gmra.mxu0 %v313
        %v377 = vpop.f32.mrf.mxu0
        %v378 = vadd.f32 0.0, %v377
        %379 = vmatmul.f32.gmra.mxu0 %v316
        %v380 = vpop.f32.mrf.mxu0
        %v381 = vadd.f32 0.0, %v380
        %382 = vmatmul.f32.gmra.mxu0 %v319
        %v383 = vpop.f32.mrf.mxu0
        %v384 = vadd.f32 0.0, %v383
        %385 = vmatmul.f32.gmra.mxu0 %v322
        %v386 = vpop.f32.mrf.mxu0
        %v387 = vadd.f32 0.0, %v386
        %388 = vmatmul.f32.gmra.mxu0 %v325
        %v389 = vpop.f32.mrf.mxu0
        %v390 = vadd.f32 0.0, %v389
        %391 = vmatmul.f32.gmra.mxu0 %v328
        %v392 = vpop.f32.mrf.mxu0
        %v393 = vadd.f32 0.0, %v392
        %394 = vmatmul.f32.gmra.mxu0 %v331
        %v395 = vpop.f32.mrf.mxu0
        %v396 = vadd.f32 0.0, %v395
        %397 = vmatmul.f32.gmra.mxu0 %v334
        %v398 = vpop.f32.mrf.mxu0
        %v399 = vadd.f32 0.0, %v398
        %400 = vmatmul.f32.gmra.mxu0 %v337
        %v401 = vpop.f32.mrf.mxu0
        %v402 = vadd.f32 0.0, %v401
        %403 = vmatmul.f32.gmra.mxu0 %v340
        %v404 = vpop.f32.mrf.mxu0
        %v405 = vadd.f32 0.0, %v404
        %406 = vdwg.mxu0
        %v407 = vlaneseq
        %v408 = vand.u32 %v407, 127
        %vm409 = vcmp.eq.s32.totalorder %v408, 32
        %v410 = vsel %vm409, 1.0, %v360
        %v411 = vsel %vm409, 1.0, %v363
        %v412 = vsel %vm409, 1.0, %v366
        %v413 = vsel %vm409, 1.0, %v369
        %v414 = vsel %vm409, 1.0, %v372
        %v415 = vsel %vm409, 1.0, %v375
        %v416 = vsel %vm409, 1.0, %v378
        %v417 = vsel %vm409, 1.0, %v381
        %v418 = vsel %vm409, 1.0, %v384
        %v419 = vsel %vm409, 1.0, %v387
        %v420 = vsel %vm409, 1.0, %v390
        %v421 = vsel %vm409, 1.0, %v393
        %v422 = vsel %vm409, 1.0, %v396
        %v423 = vsel %vm409, 1.0, %v399
        %v424 = vsel %vm409, 1.0, %v402
        %v425 = vsel %vm409, 1.0, %v405
        %s426 = sld [smem:[#allocation2]]
        %v427 = vstv %s426
        %v428 = vadd.f32 %v360, %v427
        %v429 = vadd.f32 %v363, %v427
        %v430 = vadd.f32 %v366, %v427
        %v431 = vadd.f32 %v369, %v427
        %v432 = vadd.f32 %v372, %v427
        %v433 = vadd.f32 %v375, %v427
        %v434 = vadd.f32 %v378, %v427
        %v435 = vadd.f32 %v381, %v427
        %v436 = vadd.f32 %v384, %v427
        %v437 = vadd.f32 %v387, %v427
        %v438 = vadd.f32 %v390, %v427
        %v439 = vadd.f32 %v393, %v427
        %v440 = vadd.f32 %v396, %v427
        %v441 = vadd.f32 %v399, %v427
        %v442 = vadd.f32 %v402, %v427
        %v443 = vadd.f32 %v405, %v427
        %v444 = vsel %vm409, %v428, 0.0
        %v445 = vsel %vm409, %v429, 0.0
        %v446 = vsel %vm409, %v430, 0.0
        %v447 = vsel %vm409, %v431, 0.0
        %v448 = vsel %vm409, %v432, 0.0
        %v449 = vsel %vm409, %v433, 0.0
        %v450 = vsel %vm409, %v434, 0.0
        %v451 = vsel %vm409, %v435, 0.0
        %v452 = vsel %vm409, %v436, 0.0
        %v453 = vsel %vm409, %v437, 0.0
        %v454 = vsel %vm409, %v438, 0.0
        %v455 = vsel %vm409, %v439, 0.0
        %v456 = vsel %vm409, %v440, 0.0
        %v457 = vsel %vm409, %v441, 0.0
        %v458 = vsel %vm409, %v442, 0.0
        %v459 = vsel %vm409, %v443, 0.0
        %vm460 = vcmask 523264
        %v462 = vsel %vm460, %v249, 0
        %v465 = vsel %vm460, %v250, 0
        %v468 = vsel %vm460, %v251, 0
        %v471 = vsel %vm460, %v252, 0
        %v474 = vsel %vm460, %v253, 0
        %v477 = vsel %vm460, %v254, 0
        %v480 = vsel %vm460, %v255, 0
        %v483 = vsel %vm460, %v256, 0
        %v486 = vsel %vm460, %v257, 0
        %v489 = vsel %vm460, %v258, 0
        %v492 = vsel %vm460, %v259, 0
        %v495 = vsel %vm460, %v260, 0
        %v498 = vsel %vm460, %v261, 0
        %v501 = vsel %vm460, %v262, 0
        %v504 = vsel %vm460, %v263, 0
        %v507 = vsel %vm460, %v264, 0
        %509 = vmatpush.msra.mxu0 0.0
        %510 = vmatpush.msra.mxu0 0.0
        %511 = vmatpush.msra.mxu0 0.0
        %512 = vmatpush.msra.mxu0 0.0
        %513 = vmatpush.msra.mxu0 0.0
        %514 = vmatpush.msra.mxu0 0.0
        %515 = vmatpush.msra.mxu0 0.0
        %516 = vmatpush.msra.mxu0 0.0
        %517 = vmatpush.msra.mxu0 %v272
        %518 = vmatpush.msra.mxu0 %v271
        %519 = vmatpush.msra.mxu0 %v270
        %520 = vmatpush.msra.mxu0 %v269
        %521 = vmatpush.msra.mxu0 %v268
        %522 = vmatpush.msra.mxu0 %v267
        %523 = vmatpush.msra.mxu0 %v266
        %524 = vmatpush.msra.mxu0 %v265
        %525 = vmatmul.f32.gmra.mxu0 %v462
        %v526 = vpop.f32.mrf.mxu0
        %v527 = vadd.f32 %v444, %v526
        %528 = vmatmul.f32.gmra.mxu0 %v465
        %v529 = vpop.f32.mrf.mxu0
        %v530 = vadd.f32 %v445, %v529
        %531 = vmatmul.f32.gmra.mxu0 %v468
        %v532 = vpop.f32.mrf.mxu0
        %v533 = vadd.f32 %v446, %v532
        %534 = vmatmul.f32.gmra.mxu0 %v471
        %v535 = vpop.f32.mrf.mxu0
        %v536 = vadd.f32 %v447, %v535
        %537 = vmatmul.f32.gmra.mxu0 %v474
        %v538 = vpop.f32.mrf.mxu0
        %v539 = vadd.f32 %v448, %v538
        %540 = vmatmul.f32.gmra.mxu0 %v477
        %v541 = vpop.f32.mrf.mxu0
        %v542 = vadd.f32 %v449, %v541
        %543 = vmatmul.f32.gmra.mxu0 %v480
        %v544 = vpop.f32.mrf.mxu0
        %v545 = vadd.f32 %v450, %v544
        %546 = vmatmul.f32.gmra.mxu0 %v483
        %v547 = vpop.f32.mrf.mxu0
        %v548 = vadd.f32 %v451, %v547
        %549 = vmatmul.f32.gmra.mxu0 %v486
        %v550 = vpop.f32.mrf.mxu0
        %v551 = vadd.f32 %v452, %v550
        %552 = vmatmul.f32.gmra.mxu0 %v489
        %v553 = vpop.f32.mrf.mxu0
        %v554 = vadd.f32 %v453, %v553
        %555 = vmatmul.f32.gmra.mxu0 %v492
        %v556 = vpop.f32.mrf.mxu0
        %v557 = vadd.f32 %v454, %v556
        %558 = vmatmul.f32.gmra.mxu0 %v495
        %v559 = vpop.f32.mrf.mxu0
        %v560 = vadd.f32 %v455, %v559
        %561 = vmatmul.f32.gmra.mxu0 %v498
        %v562 = vpop.f32.mrf.mxu0
        %v563 = vadd.f32 %v456, %v562
        %564 = vmatmul.f32.gmra.mxu0 %v501
        %v565 = vpop.f32.mrf.mxu0
        %v566 = vadd.f32 %v457, %v565
        %567 = vmatmul.f32.gmra.mxu0 %v504
        %v568 = vpop.f32.mrf.mxu0
        %v569 = vadd.f32 %v458, %v568
        %570 = vmatmul.f32.gmra.mxu0 %v507
        %v571 = vpop.f32.mrf.mxu0
        %v572 = vadd.f32 %v459, %v571
        %573 = vdwg.mxu0
        %vm574 = vcmask 269312
        %v576 = vsel %vm574, %v410, 0
        %v579 = vsel %vm574, %v527, 0
        %581 = vmatpush.xpose.msra.mxu0 0.0
        %582 = vmatpush.xpose.msra.mxu0 0.0
        %583 = vmatpush.xpose.msra.mxu0 0.0
        %584 = vmatpush.xpose.msra.mxu0 0.0
        %585 = vmatpush.xpose.msra.mxu0 0.0
        %586 = vmatpush.xpose.msra.mxu0 0.0
        %587 = vmatpush.xpose.msra.mxu0 0.0
        %588 = vmatpush.xpose.msra.mxu0 0.0
        %589 = vmatpush.xpose.msra.mxu0 0.0
        %590 = vmatpush.xpose.msra.mxu0 0.0
        %591 = vmatpush.xpose.msra.mxu0 0.0
        %592 = vmatpush.xpose.msra.mxu0 0.0
        %593 = vmatpush.xpose.msra.mxu0 0.0
        %594 = vmatpush.xpose.msra.mxu0 0.0
        %595 = vmatpush.xpose.msra.mxu0 0.0
        %596 = vmatpush.xpose.msra.mxu0 %v579
        %597 = vmatmul.f32.gmra.mxu0 %v576
        %v598 = vpop.f32.mrf.mxu0
        %v599 = vadd.f32 0.0, %v598
        %600 = vdwg.mxu0
        %v602 = vsel %vm574, %v411, 0
        %v605 = vsel %vm574, %v530, 0
        %607 = vmatpush.xpose.msra.mxu0 0.0
        %608 = vmatpush.xpose.msra.mxu0 0.0
        %609 = vmatpush.xpose.msra.mxu0 0.0
        %610 = vmatpush.xpose.msra.mxu0 0.0
        %611 = vmatpush.xpose.msra.mxu0 0.0
        %612 = vmatpush.xpose.msra.mxu0 0.0
        %613 = vmatpush.xpose.msra.mxu0 0.0
        %614 = vmatpush.xpose.msra.mxu0 0.0
        %615 = vmatpush.xpose.msra.mxu0 0.0
        %616 = vmatpush.xpose.msra.mxu0 0.0
        %617 = vmatpush.xpose.msra.mxu0 0.0
        %618 = vmatpush.xpose.msra.mxu0 0.0
        %619 = vmatpush.xpose.msra.mxu0 0.0
        %620 = vmatpush.xpose.msra.mxu0 0.0
        %621 = vmatpush.xpose.msra.mxu0 0.0
        %622 = vmatpush.xpose.msra.mxu0 %v605
        %623 = vmatmul.f32.gmra.mxu0 %v602
        %v624 = vpop.f32.mrf.mxu0
        %v625 = vadd.f32 0.0, %v624
        %626 = vdwg.mxu0
        %v628 = vsel %vm574, %v412, 0
        %v631 = vsel %vm574, %v533, 0
        %633 = vmatpush.xpose.msra.mxu0 0.0
        %634 = vmatpush.xpose.msra.mxu0 0.0
        %635 = vmatpush.xpose.msra.mxu0 0.0
        %636 = vmatpush.xpose.msra.mxu0 0.0
        %637 = vmatpush.xpose.msra.mxu0 0.0
        %638 = vmatpush.xpose.msra.mxu0 0.0
        %639 = vmatpush.xpose.msra.mxu0 0.0
        %640 = vmatpush.xpose.msra.mxu0 0.0
        %641 = vmatpush.xpose.msra.mxu0 0.0
        %642 = vmatpush.xpose.msra.mxu0 0.0
        %643 = vmatpush.xpose.msra.mxu0 0.0
        %644 = vmatpush.xpose.msra.mxu0 0.0
        %645 = vmatpush.xpose.msra.mxu0 0.0
        %646 = vmatpush.xpose.msra.mxu0 0.0
        %647 = vmatpush.xpose.msra.mxu0 0.0
        %648 = vmatpush.xpose.msra.mxu0 %v631
        %649 = vmatmul.f32.gmra.mxu0 %v628
        %v650 = vpop.f32.mrf.mxu0
        %v651 = vadd.f32 0.0, %v650
        %652 = vdwg.mxu0
        %v654 = vsel %vm574, %v413, 0
        %v657 = vsel %vm574, %v536, 0
        %659 = vmatpush.xpose.msra.mxu0 0.0
        %660 = vmatpush.xpose.msra.mxu0 0.0
        %661 = vmatpush.xpose.msra.mxu0 0.0
        %662 = vmatpush.xpose.msra.mxu0 0.0
        %663 = vmatpush.xpose.msra.mxu0 0.0
        %664 = vmatpush.xpose.msra.mxu0 0.0
        %665 = vmatpush.xpose.msra.mxu0 0.0
        %666 = vmatpush.xpose.msra.mxu0 0.0
        %667 = vmatpush.xpose.msra.mxu0 0.0
        %668 = vmatpush.xpose.msra.mxu0 0.0
        %669 = vmatpush.xpose.msra.mxu0 0.0
        %670 = vmatpush.xpose.msra.mxu0 0.0
        %671 = vmatpush.xpose.msra.mxu0 0.0
        %672 = vmatpush.xpose.msra.mxu0 0.0
        %673 = vmatpush.xpose.msra.mxu0 0.0
        %674 = vmatpush.xpose.msra.mxu0 %v657
        %675 = vmatmul.f32.gmra.mxu0 %v654
        %v676 = vpop.f32.mrf.mxu0
        %v677 = vadd.f32 0.0, %v676
        %678 = vdwg.mxu0
        %v680 = vsel %vm574, %v414, 0
        %v683 = vsel %vm574, %v539, 0
        %685 = vmatpush.xpose.msra.mxu0 0.0
        %686 = vmatpush.xpose.msra.mxu0 0.0
        %687 = vmatpush.xpose.msra.mxu0 0.0
        %688 = vmatpush.xpose.msra.mxu0 0.0
        %689 = vmatpush.xpose.msra.mxu0 0.0
        %690 = vmatpush.xpose.msra.mxu0 0.0
        %691 = vmatpush.xpose.msra.mxu0 0.0
        %692 = vmatpush.xpose.msra.mxu0 0.0
        %693 = vmatpush.xpose.msra.mxu0 0.0
        %694 = vmatpush.xpose.msra.mxu0 0.0
        %695 = vmatpush.xpose.msra.mxu0 0.0
        %696 = vmatpush.xpose.msra.mxu0 0.0
        %697 = vmatpush.xpose.msra.mxu0 0.0
        %698 = vmatpush.xpose.msra.mxu0 0.0
        %699 = vmatpush.xpose.msra.mxu0 0.0
        %700 = vmatpush.xpose.msra.mxu0 %v683
        %701 = vmatmul.f32.gmra.mxu0 %v680
        %v702 = vpop.f32.mrf.mxu0
        %v703 = vadd.f32 0.0, %v702
        %704 = vdwg.mxu0
        %v706 = vsel %vm574, %v415, 0
        %v709 = vsel %vm574, %v542, 0
        %711 = vmatpush.xpose.msra.mxu0 0.0
        %712 = vmatpush.xpose.msra.mxu0 0.0
        %713 = vmatpush.xpose.msra.mxu0 0.0
        %714 = vmatpush.xpose.msra.mxu0 0.0
        %715 = vmatpush.xpose.msra.mxu0 0.0
        %716 = vmatpush.xpose.msra.mxu0 0.0
        %717 = vmatpush.xpose.msra.mxu0 0.0
        %718 = vmatpush.xpose.msra.mxu0 0.0
        %719 = vmatpush.xpose.msra.mxu0 0.0
        %720 = vmatpush.xpose.msra.mxu0 0.0
        %721 = vmatpush.xpose.msra.mxu0 0.0
        %722 = vmatpush.xpose.msra.mxu0 0.0
        %723 = vmatpush.xpose.msra.mxu0 0.0
        %724 = vmatpush.xpose.msra.mxu0 0.0
        %725 = vmatpush.xpose.msra.mxu0 0.0
        %726 = vmatpush.xpose.msra.mxu0 %v709
        %727 = vmatmul.f32.gmra.mxu0 %v706
        %v728 = vpop.f32.mrf.mxu0
        %v729 = vadd.f32 0.0, %v728
        %730 = vdwg.mxu0
        %v732 = vsel %vm574, %v416, 0
        %v735 = vsel %vm574, %v545, 0
        %737 = vmatpush.xpose.msra.mxu0 0.0
        %738 = vmatpush.xpose.msra.mxu0 0.0
        %739 = vmatpush.xpose.msra.mxu0 0.0
        %740 = vmatpush.xpose.msra.mxu0 0.0
        %741 = vmatpush.xpose.msra.mxu0 0.0
        %742 = vmatpush.xpose.msra.mxu0 0.0
        %743 = vmatpush.xpose.msra.mxu0 0.0
        %744 = vmatpush.xpose.msra.mxu0 0.0
        %745 = vmatpush.xpose.msra.mxu0 0.0
        %746 = vmatpush.xpose.msra.mxu0 0.0
        %747 = vmatpush.xpose.msra.mxu0 0.0
        %748 = vmatpush.xpose.msra.mxu0 0.0
        %749 = vmatpush.xpose.msra.mxu0 0.0
        %750 = vmatpush.xpose.msra.mxu0 0.0
        %751 = vmatpush.xpose.msra.mxu0 0.0
        %752 = vmatpush.xpose.msra.mxu0 %v735
        %753 = vmatmul.f32.gmra.mxu0 %v732
        %v754 = vpop.f32.mrf.mxu0
        %v755 = vadd.f32 0.0, %v754
        %756 = vdwg.mxu0
        %v758 = vsel %vm574, %v417, 0
        %v761 = vsel %vm574, %v548, 0
        %763 = vmatpush.xpose.msra.mxu0 0.0
        %764 = vmatpush.xpose.msra.mxu0 0.0
        %765 = vmatpush.xpose.msra.mxu0 0.0
        %766 = vmatpush.xpose.msra.mxu0 0.0
        %767 = vmatpush.xpose.msra.mxu0 0.0
        %768 = vmatpush.xpose.msra.mxu0 0.0
        %769 = vmatpush.xpose.msra.mxu0 0.0
        %770 = vmatpush.xpose.msra.mxu0 0.0
        %771 = vmatpush.xpose.msra.mxu0 0.0
        %772 = vmatpush.xpose.msra.mxu0 0.0
        %773 = vmatpush.xpose.msra.mxu0 0.0
        %774 = vmatpush.xpose.msra.mxu0 0.0
        %775 = vmatpush.xpose.msra.mxu0 0.0
        %776 = vmatpush.xpose.msra.mxu0 0.0
        %777 = vmatpush.xpose.msra.mxu0 0.0
        %778 = vmatpush.xpose.msra.mxu0 %v761
        %779 = vmatmul.f32.gmra.mxu0 %v758
        %v780 = vpop.f32.mrf.mxu0
        %v781 = vadd.f32 0.0, %v780
        %782 = vdwg.mxu0
        %v784 = vsel %vm574, %v418, 0
        %v787 = vsel %vm574, %v551, 0
        %789 = vmatpush.xpose.msra.mxu0 0.0
        %790 = vmatpush.xpose.msra.mxu0 0.0
        %791 = vmatpush.xpose.msra.mxu0 0.0
        %792 = vmatpush.xpose.msra.mxu0 0.0
        %793 = vmatpush.xpose.msra.mxu0 0.0
        %794 = vmatpush.xpose.msra.mxu0 0.0
        %795 = vmatpush.xpose.msra.mxu0 0.0
        %796 = vmatpush.xpose.msra.mxu0 0.0
        %797 = vmatpush.xpose.msra.mxu0 0.0
        %798 = vmatpush.xpose.msra.mxu0 0.0
        %799 = vmatpush.xpose.msra.mxu0 0.0
        %800 = vmatpush.xpose.msra.mxu0 0.0
        %801 = vmatpush.xpose.msra.mxu0 0.0
        %802 = vmatpush.xpose.msra.mxu0 0.0
        %803 = vmatpush.xpose.msra.mxu0 0.0
        %804 = vmatpush.xpose.msra.mxu0 %v787
        %805 = vmatmul.f32.gmra.mxu0 %v784
        %v806 = vpop.f32.mrf.mxu0
        %v807 = vadd.f32 0.0, %v806
        %808 = vdwg.mxu0
        %v810 = vsel %vm574, %v419, 0
        %v813 = vsel %vm574, %v554, 0
        %815 = vmatpush.xpose.msra.mxu0 0.0
        %816 = vmatpush.xpose.msra.mxu0 0.0
        %817 = vmatpush.xpose.msra.mxu0 0.0
        %818 = vmatpush.xpose.msra.mxu0 0.0
        %819 = vmatpush.xpose.msra.mxu0 0.0
        %820 = vmatpush.xpose.msra.mxu0 0.0
        %821 = vmatpush.xpose.msra.mxu0 0.0
        %822 = vmatpush.xpose.msra.mxu0 0.0
        %823 = vmatpush.xpose.msra.mxu0 0.0
        %824 = vmatpush.xpose.msra.mxu0 0.0
        %825 = vmatpush.xpose.msra.mxu0 0.0
        %826 = vmatpush.xpose.msra.mxu0 0.0
        %827 = vmatpush.xpose.msra.mxu0 0.0
        %828 = vmatpush.xpose.msra.mxu0 0.0
        %829 = vmatpush.xpose.msra.mxu0 0.0
        %830 = vmatpush.xpose.msra.mxu0 %v813
        %831 = vmatmul.f32.gmra.mxu0 %v810
        %v832 = vpop.f32.mrf.mxu0
        %v833 = vadd.f32 0.0, %v832
        %834 = vdwg.mxu0
        %v836 = vsel %vm574, %v420, 0
        %v839 = vsel %vm574, %v557, 0
        %841 = vmatpush.xpose.msra.mxu0 0.0
        %842 = vmatpush.xpose.msra.mxu0 0.0
        %843 = vmatpush.xpose.msra.mxu0 0.0
        %844 = vmatpush.xpose.msra.mxu0 0.0
        %845 = vmatpush.xpose.msra.mxu0 0.0
        %846 = vmatpush.xpose.msra.mxu0 0.0
        %847 = vmatpush.xpose.msra.mxu0 0.0
        %848 = vmatpush.xpose.msra.mxu0 0.0
        %849 = vmatpush.xpose.msra.mxu0 0.0
        %850 = vmatpush.xpose.msra.mxu0 0.0
        %851 = vmatpush.xpose.msra.mxu0 0.0
        %852 = vmatpush.xpose.msra.mxu0 0.0
        %853 = vmatpush.xpose.msra.mxu0 0.0
        %854 = vmatpush.xpose.msra.mxu0 0.0
        %855 = vmatpush.xpose.msra.mxu0 0.0
        %856 = vmatpush.xpose.msra.mxu0 %v839
        %857 = vmatmul.f32.gmra.mxu0 %v836
        %v858 = vpop.f32.mrf.mxu0
        %v859 = vadd.f32 0.0, %v858
        %860 = vdwg.mxu0
        %v862 = vsel %vm574, %v421, 0
        %v865 = vsel %vm574, %v560, 0
        %867 = vmatpush.xpose.msra.mxu0 0.0
        %868 = vmatpush.xpose.msra.mxu0 0.0
        %869 = vmatpush.xpose.msra.mxu0 0.0
        %870 = vmatpush.xpose.msra.mxu0 0.0
        %871 = vmatpush.xpose.msra.mxu0 0.0
        %872 = vmatpush.xpose.msra.mxu0 0.0
        %873 = vmatpush.xpose.msra.mxu0 0.0
        %874 = vmatpush.xpose.msra.mxu0 0.0
        %875 = vmatpush.xpose.msra.mxu0 0.0
        %876 = vmatpush.xpose.msra.mxu0 0.0
        %877 = vmatpush.xpose.msra.mxu0 0.0
        %878 = vmatpush.xpose.msra.mxu0 0.0
        %879 = vmatpush.xpose.msra.mxu0 0.0
        %880 = vmatpush.xpose.msra.mxu0 0.0
        %881 = vmatpush.xpose.msra.mxu0 0.0
        %882 = vmatpush.xpose.msra.mxu0 %v865
        %883 = vmatmul.f32.gmra.mxu0 %v862
        %v884 = vpop.f32.mrf.mxu0
        %v885 = vadd.f32 0.0, %v884
        %886 = vdwg.mxu0
        %v888 = vsel %vm574, %v422, 0
        %v891 = vsel %vm574, %v563, 0
        %893 = vmatpush.xpose.msra.mxu0 0.0
        %894 = vmatpush.xpose.msra.mxu0 0.0
        %895 = vmatpush.xpose.msra.mxu0 0.0
        %896 = vmatpush.xpose.msra.mxu0 0.0
        %897 = vmatpush.xpose.msra.mxu0 0.0
        %898 = vmatpush.xpose.msra.mxu0 0.0
        %899 = vmatpush.xpose.msra.mxu0 0.0
        %900 = vmatpush.xpose.msra.mxu0 0.0
        %901 = vmatpush.xpose.msra.mxu0 0.0
        %902 = vmatpush.xpose.msra.mxu0 0.0
        %903 = vmatpush.xpose.msra.mxu0 0.0
        %904 = vmatpush.xpose.msra.mxu0 0.0
        %905 = vmatpush.xpose.msra.mxu0 0.0
        %906 = vmatpush.xpose.msra.mxu0 0.0
        %907 = vmatpush.xpose.msra.mxu0 0.0
        %908 = vmatpush.xpose.msra.mxu0 %v891
        %909 = vmatmul.f32.gmra.mxu0 %v888
        %v910 = vpop.f32.mrf.mxu0
        %v911 = vadd.f32 0.0, %v910
        %912 = vdwg.mxu0
        %v914 = vsel %vm574, %v423, 0
        %v917 = vsel %vm574, %v566, 0
        %919 = vmatpush.xpose.msra.mxu0 0.0
        %920 = vmatpush.xpose.msra.mxu0 0.0
        %921 = vmatpush.xpose.msra.mxu0 0.0
        %922 = vmatpush.xpose.msra.mxu0 0.0
        %923 = vmatpush.xpose.msra.mxu0 0.0
        %924 = vmatpush.xpose.msra.mxu0 0.0
        %925 = vmatpush.xpose.msra.mxu0 0.0
        %926 = vmatpush.xpose.msra.mxu0 0.0
        %927 = vmatpush.xpose.msra.mxu0 0.0
        %928 = vmatpush.xpose.msra.mxu0 0.0
        %929 = vmatpush.xpose.msra.mxu0 0.0
        %930 = vmatpush.xpose.msra.mxu0 0.0
        %931 = vmatpush.xpose.msra.mxu0 0.0
        %932 = vmatpush.xpose.msra.mxu0 0.0
        %933 = vmatpush.xpose.msra.mxu0 0.0
        %934 = vmatpush.xpose.msra.mxu0 %v917
        %935 = vmatmul.f32.gmra.mxu0 %v914
        %v936 = vpop.f32.mrf.mxu0
        %v937 = vadd.f32 0.0, %v936
        %938 = vdwg.mxu0
        %v940 = vsel %vm574, %v424, 0
        %v943 = vsel %vm574, %v569, 0
        %945 = vmatpush.xpose.msra.mxu0 0.0
        %946 = vmatpush.xpose.msra.mxu0 0.0
        %947 = vmatpush.xpose.msra.mxu0 0.0
        %948 = vmatpush.xpose.msra.mxu0 0.0
        %949 = vmatpush.xpose.msra.mxu0 0.0
        %950 = vmatpush.xpose.msra.mxu0 0.0
        %951 = vmatpush.xpose.msra.mxu0 0.0
        %952 = vmatpush.xpose.msra.mxu0 0.0
        %953 = vmatpush.xpose.msra.mxu0 0.0
        %954 = vmatpush.xpose.msra.mxu0 0.0
        %955 = vmatpush.xpose.msra.mxu0 0.0
        %956 = vmatpush.xpose.msra.mxu0 0.0
        %957 = vmatpush.xpose.msra.mxu0 0.0
        %958 = vmatpush.xpose.msra.mxu0 0.0
        %959 = vmatpush.xpose.msra.mxu0 0.0
        %960 = vmatpush.xpose.msra.mxu0 %v943
        %961 = vmatmul.f32.gmra.mxu0 %v940
        %v962 = vpop.f32.mrf.mxu0
        %v963 = vadd.f32 0.0, %v962
        %964 = vdwg.mxu0
        %v966 = vsel %vm574, %v425, 0
        %v969 = vsel %vm574, %v572, 0
        %971 = vmatpush.xpose.msra.mxu0 0.0
        %972 = vmatpush.xpose.msra.mxu0 0.0
        %973 = vmatpush.xpose.msra.mxu0 0.0
        %974 = vmatpush.xpose.msra.mxu0 0.0
        %975 = vmatpush.xpose.msra.mxu0 0.0
        %976 = vmatpush.xpose.msra.mxu0 0.0
        %977 = vmatpush.xpose.msra.mxu0 0.0
        %978 = vmatpush.xpose.msra.mxu0 0.0
        %979 = vmatpush.xpose.msra.mxu0 0.0
        %980 = vmatpush.xpose.msra.mxu0 0.0
        %981 = vmatpush.xpose.msra.mxu0 0.0
        %982 = vmatpush.xpose.msra.mxu0 0.0
        %983 = vmatpush.xpose.msra.mxu0 0.0
        %984 = vmatpush.xpose.msra.mxu0 0.0
        %985 = vmatpush.xpose.msra.mxu0 0.0
        %986 = vmatpush.xpose.msra.mxu0 %v969
        %987 = vmatmul.f32.gmra.mxu0 %v966
        %v988 = vpop.f32.mrf.mxu0
        %v989 = vadd.f32 0.0, %v988
        %990 = vdwg.mxu0
        %v991 = vrot.slane %v651, 4
        %vm992 = vcmask 1047556
        %v993 = vsel %vm992, %v991, %v599
        %v994 = vrot.slane %v599, 4
        %v995 = vsel %vm992, %v651, %v994
        %v997 = vunpack.c.l.s4 1983009808
        %v998 = vunpack.c.0.s8 %v997
        %v999 = vperm.slane %v993, %v998
        %v1001 = vunpack.c.l.s4 1983009808
        %v1002 = vunpack.c.0.s8 %v1001
        %v1003 = vperm.slane %v995, %v1002
        %v1004 = vrot.slane %v677, 4
        %v1005 = vsel %vm992, %v1004, %v625
        %v1006 = vrot.slane %v625, 4
        %v1007 = vsel %vm992, %v677, %v1006
        %v1009 = vunpack.c.l.s4 1983009808
        %v1010 = vunpack.c.0.s8 %v1009
        %v1011 = vperm.slane %v1005, %v1010
        %v1013 = vunpack.c.l.s4 1983009808
        %v1014 = vunpack.c.0.s8 %v1013
        %v1015 = vperm.slane %v1007, %v1014
        %v1016 = vrot.slane %v755, 4
        %v1017 = vsel %vm992, %v1016, %v703
        %v1018 = vrot.slane %v703, 4
        %v1019 = vsel %vm992, %v755, %v1018
        %v1021 = vunpack.c.l.s4 1983009808
        %v1022 = vunpack.c.0.s8 %v1021
        %v1023 = vperm.slane %v1017, %v1022
        %v1025 = vunpack.c.l.s4 1983009808
        %v1026 = vunpack.c.0.s8 %v1025
        %v1027 = vperm.slane %v1019, %v1026
        %v1028 = vrot.slane %v781, 4
        %v1029 = vsel %vm992, %v1028, %v729
        %v1030 = vrot.slane %v729, 4
        %v1031 = vsel %vm992, %v781, %v1030
        %v1033 = vunpack.c.l.s4 1983009808
        %v1034 = vunpack.c.0.s8 %v1033
        %v1035 = vperm.slane %v1029, %v1034
        %v1037 = vunpack.c.l.s4 1983009808
        %v1038 = vunpack.c.0.s8 %v1037
        %v1039 = vperm.slane %v1031, %v1038
        %v1040 = vrot.slane %v1011, 4
        %v1041 = vsel %vm992, %v1040, %v999
        %v1042 = vrot.slane %v999, 4
        %v1043 = vsel %vm992, %v1011, %v1042
        %v1045 = vunpack.c.l.s4 1934713408
        %v1046 = vunpack.c.0.s8 %v1045
        %v1047 = vperm.slane %v1041, %v1046
        %v1049 = vunpack.c.l.s4 1934713408
        %v1050 = vunpack.c.0.s8 %v1049
        %v1051 = vperm.slane %v1043, %v1050
        %v1052 = vrot.slane %v1015, 4
        %v1053 = vsel %vm992, %v1052, %v1003
        %v1054 = vrot.slane %v1003, 4
        %v1055 = vsel %vm992, %v1015, %v1054
        %v1057 = vunpack.c.l.s4 1934713408
        %v1058 = vunpack.c.0.s8 %v1057
        %v1059 = vperm.slane %v1053, %v1058
        %v1061 = vunpack.c.l.s4 1934713408
        %v1062 = vunpack.c.0.s8 %v1061
        %v1063 = vperm.slane %v1055, %v1062
        %v1064 = vrot.slane %v1035, 4
        %v1065 = vsel %vm992, %v1064, %v1023
        %v1066 = vrot.slane %v1023, 4
        %v1067 = vsel %vm992, %v1035, %v1066
        %v1069 = vunpack.c.l.s4 1934713408
        %v1070 = vunpack.c.0.s8 %v1069
        %v1071 = vperm.slane %v1065, %v1070
        %v1073 = vunpack.c.l.s4 1934713408
        %v1074 = vunpack.c.0.s8 %v1073
        %v1075 = vperm.slane %v1067, %v1074
        %v1076 = vrot.slane %v1039, 4
        %v1077 = vsel %vm992, %v1076, %v1027
        %v1078 = vrot.slane %v1027, 4
        %v1079 = vsel %vm992, %v1039, %v1078
        %v1081 = vunpack.c.l.s4 1934713408
        %v1082 = vunpack.c.0.s8 %v1081
        %v1083 = vperm.slane %v1077, %v1082
        %v1085 = vunpack.c.l.s4 1934713408
        %v1086 = vunpack.c.0.s8 %v1085
        %v1087 = vperm.slane %v1079, %v1086
        %v1088 = vrot.slane %v1071, 4
        %v1089 = vsel %vm992, %v1088, %v1047
        %v1090 = vrot.slane %v1047, 4
        %v1091 = vsel %vm992, %v1071, %v1090
        %v1092 = vrot.slane %v1075, 4
        %v1093 = vsel %vm992, %v1092, %v1051
        %v1094 = vrot.slane %v1051, 4
        %v1095 = vsel %vm992, %v1075, %v1094
        %v1096 = vrot.slane %v1083, 4
        %v1097 = vsel %vm992, %v1096, %v1059
        %v1098 = vrot.slane %v1059, 4
        %v1099 = vsel %vm992, %v1083, %v1098
        %v1100 = vrot.slane %v1087, 4
        %v1101 = vsel %vm992, %v1100, %v1063
        %v1102 = vrot.slane %v1063, 4
        %v1103 = vsel %vm992, %v1087, %v1102
        %v1104 = vrot.slane %v859, 4
        %v1105 = vsel %vm992, %v1104, %v807
        %v1106 = vrot.slane %v807, 4
        %v1107 = vsel %vm992, %v859, %v1106
        %v1109 = vunpack.c.l.s4 1983009808
        %v1110 = vunpack.c.0.s8 %v1109
        %v1111 = vperm.slane %v1105, %v1110
        %v1113 = vunpack.c.l.s4 1983009808
        %v1114 = vunpack.c.0.s8 %v1113
        %v1115 = vperm.slane %v1107, %v1114
        %v1116 = vrot.slane %v885, 4
        %v1117 = vsel %vm992, %v1116, %v833
        %v1118 = vrot.slane %v833, 4
        %v1119 = vsel %vm992, %v885, %v1118
        %v1121 = vunpack.c.l.s4 1983009808
        %v1122 = vunpack.c.0.s8 %v1121
        %v1123 = vperm.slane %v1117, %v1122
        %v1125 = vunpack.c.l.s4 1983009808
        %v1126 = vunpack.c.0.s8 %v1125
        %v1127 = vperm.slane %v1119, %v1126
        %v1128 = vrot.slane %v963, 4
        %v1129 = vsel %vm992, %v1128, %v911
        %v1130 = vrot.slane %v911, 4
        %v1131 = vsel %vm992, %v963, %v1130
        %v1133 = vunpack.c.l.s4 1983009808
        %v1134 = vunpack.c.0.s8 %v1133
        %v1135 = vperm.slane %v1129, %v1134
        %v1137 = vunpack.c.l.s4 1983009808
        %v1138 = vunpack.c.0.s8 %v1137
        %v1139 = vperm.slane %v1131, %v1138
        %v1140 = vrot.slane %v989, 4
        %v1141 = vsel %vm992, %v1140, %v937
        %v1142 = vrot.slane %v937, 4
        %v1143 = vsel %vm992, %v989, %v1142
        %v1145 = vunpack.c.l.s4 1983009808
        %v1146 = vunpack.c.0.s8 %v1145
        %v1147 = vperm.slane %v1141, %v1146
        %v1149 = vunpack.c.l.s4 1983009808
        %v1150 = vunpack.c.0.s8 %v1149
        %v1151 = vperm.slane %v1143, %v1150
        %v1152 = vrot.slane %v1123, 4
        %v1153 = vsel %vm992, %v1152, %v1111
        %v1154 = vrot.slane %v1111, 4
        %v1155 = vsel %vm992, %v1123, %v1154
        %v1157 = vunpack.c.l.s4 1934713408
        %v1158 = vunpack.c.0.s8 %v1157
        %v1159 = vperm.slane %v1153, %v1158
        %v1161 = vunpack.c.l.s4 1934713408
        %v1162 = vunpack.c.0.s8 %v1161
        %v1163 = vperm.slane %v1155, %v1162
        %v1164 = vrot.slane %v1127, 4
        %v1165 = vsel %vm992, %v1164, %v1115
        %v1166 = vrot.slane %v1115, 4
        %v1167 = vsel %vm992, %v1127, %v1166
        %v1169 = vunpack.c.l.s4 1934713408
        %v1170 = vunpack.c.0.s8 %v1169
        %v1171 = vperm.slane %v1165, %v1170
        %v1173 = vunpack.c.l.s4 1934713408
        %v1174 = vunpack.c.0.s8 %v1173
        %v1175 = vperm.slane %v1167, %v1174
        %v1176 = vrot.slane %v1147, 4
        %v1177 = vsel %vm992, %v1176, %v1135
        %v1178 = vrot.slane %v1135, 4
        %v1179 = vsel %vm992, %v1147, %v1178
        %v1181 = vunpack.c.l.s4 1934713408
        %v1182 = vunpack.c.0.s8 %v1181
        %v1183 = vperm.slane %v1177, %v1182
        %v1185 = vunpack.c.l.s4 1934713408
        %v1186 = vunpack.c.0.s8 %v1185
        %v1187 = vperm.slane %v1179, %v1186
        %v1188 = vrot.slane %v1151, 4
        %v1189 = vsel %vm992, %v1188, %v1139
        %v1190 = vrot.slane %v1139, 4
        %v1191 = vsel %vm992, %v1151, %v1190
        %v1193 = vunpack.c.l.s4 1934713408
        %v1194 = vunpack.c.0.s8 %v1193
        %v1195 = vperm.slane %v1189, %v1194
        %v1197 = vunpack.c.l.s4 1934713408
        %v1198 = vunpack.c.0.s8 %v1197
        %v1199 = vperm.slane %v1191, %v1198
        %v1200 = vrot.slane %v1183, 4
        %v1201 = vsel %vm992, %v1200, %v1159
        %v1202 = vrot.slane %v1159, 4
        %v1203 = vsel %vm992, %v1183, %v1202
        %v1204 = vrot.slane %v1187, 4
        %v1205 = vsel %vm992, %v1204, %v1163
        %v1206 = vrot.slane %v1163, 4
        %v1207 = vsel %vm992, %v1187, %v1206
        %v1208 = vrot.slane %v1195, 4
        %v1209 = vsel %vm992, %v1208, %v1171
        %v1210 = vrot.slane %v1171, 4
        %v1211 = vsel %vm992, %v1195, %v1210
        %v1212 = vrot.slane %v1199, 4
        %v1213 = vsel %vm992, %v1212, %v1175
        %v1214 = vrot.slane %v1175, 4
        %v1215 = vsel %vm992, %v1199, %v1214
        %1218 = vrot.lane.b32.xlu0 %v1091, 8
        %v1219 = vpop.permute.xlu0 %1218
        %1220 = vrot.lane.b32.xlu0 %v1203, 8
        %v1221 = vpop.permute.xlu0 %1220
        %1226 = vrot.lane.b32.xlu0 %v1093, 16
        %v1227 = vpop.permute.xlu0 %1226
        %1228 = vrot.lane.b32.xlu0 %v1205, 16
        %v1229 = vpop.permute.xlu0 %1228
        %1234 = vrot.lane.b32.xlu0 %v1095, 24
        %v1235 = vpop.permute.xlu0 %1234
        %1236 = vrot.lane.b32.xlu0 %v1207, 24
        %v1237 = vpop.permute.xlu0 %1236
        %1242 = vrot.lane.b32.xlu0 %v1097, 32
        %v1243 = vpop.permute.xlu0 %1242
        %1244 = vrot.lane.b32.xlu0 %v1209, 32
        %v1245 = vpop.permute.xlu0 %1244
        %1250 = vrot.lane.b32.xlu0 %v1099, 40
        %v1251 = vpop.permute.xlu0 %1250
        %1252 = vrot.lane.b32.xlu0 %v1211, 40
        %v1253 = vpop.permute.xlu0 %1252
        %1258 = vrot.lane.b32.xlu0 %v1101, 48
        %v1259 = vpop.permute.xlu0 %1258
        %1260 = vrot.lane.b32.xlu0 %v1213, 48
        %v1261 = vpop.permute.xlu0 %1260
        %1266 = vrot.lane.b32.xlu0 %v1103, 56
        %v1267 = vpop.permute.xlu0 %1266
        %1268 = vrot.lane.b32.xlu0 %v1215, 56
        %v1269 = vpop.permute.xlu0 %1268
        %vm1272 = vcmask 64512
        %v1273 = vsel %vm1272, %v1089, %v1219
        %v1274 = vsel %vm1272, %v1201, %v1221
        %vm1275 = vcmask 130048
        %v1276 = vsel %vm1275, %v1273, %v1227
        %v1277 = vsel %vm1275, %v1274, %v1229
        %vm1278 = vcmask 195584
        %v1279 = vsel %vm1278, %v1276, %v1235
        %v1280 = vsel %vm1278, %v1277, %v1237
        %v1281 = vsel %vm293, %v1279, %v1243
        %v1282 = vsel %vm293, %v1280, %v1245
        %vm1283 = vcmask 326656
        %v1284 = vsel %vm1283, %v1281, %v1251
        %v1285 = vsel %vm1283, %v1282, %v1253
        %vm1286 = vcmask 392192
        %v1287 = vsel %vm1286, %v1284, %v1259
        %v1288 = vsel %vm1286, %v1285, %v1261
        %vm1289 = vcmask 457728
        %v1290 = vsel %vm1289, %v1287, %v1267
        %v1291 = vsel %vm1289, %v1288, %v1269
        %1292 = vst.msk [vmem:[%s235] sm:$0xff] %vm460, %v1290
        %1293 = vst.msk [vmem:[%s235 + $0x8] sm:$0xff] %vm460, %v1291
        %s1294 = sand.u32 %s143, 1
        %s1295 = scalar_lea.sflag [#allocation4], %s1294
        %s1296 = sand.u32 %s143, 1
        %s1297 = smul.addr %s1296, 16
        %s1298 = scalar_lea.vmem [#allocation3], %s1297
        // Predicated region
        $region41: #{tpu_custom_call.1} parent=39 // pred_check
          %p1299 = pneg %p153
        $region42: #{tpu_custom_call.1} parent=39 // pred_check_branch
          %1301 = sbr.rel (%p1299) target = $region44
        $region43: #{tpu_custom_call.1} parent=39 // pred_region
          %s1302 = smul.u32 2, %s20
          %1304 = vsyncadd %s1295, 0
          %s1305 = smul.addr %s1302, 8
          %s1306 = scalar_lea.hbm %s5, %s1305
          %s1307 = sshll.u32 %s1298, 4
          %s1308 = int_to_ptr.vmem [resolvable:$true] %s1307
          %s1309 = sshll.u32 %s1306, 4
          %s1310 = int_to_ptr.hbm [resolvable:$true] %s1309
          %1315 = dma.vmem_to_hbm [thread:$0]  %s1308, 256, %s1310, %s1295, 128, 128, 8
        $region44: #{tpu_custom_call.1} parent=39 // pred_fallthru
          _
      $region40: #{tpu_custom_call.1} parent=5 // pred_fallthru
        _
      %p1316 = scmp.le.s32.totalorder 2, %s15
      // Predicated region
      $region45: #{tpu_custom_call.1} parent=5 // pred_check
        %p1317 = pneg %p1316
      $region46: #{tpu_custom_call.1} parent=5 // pred_check_branch
        %1319 = sbr.rel (%p1317) target = $region48
      $region47: #{tpu_custom_call.1} parent=5 // pred_region
        %s1320 = ssub.s32 %s15, 2
        // Predicated region
        $region49: #{tpu_custom_call.1} parent=47 // pred_check
          %p1321 = pneg %p159
        $region50: #{tpu_custom_call.1} parent=47 // pred_check_branch
          %1323 = sbr.rel (%p1321) target = $region52
        $region51: #{tpu_custom_call.1} parent=47 // pred_region
          %s1324 = sand.u32 %s144, 1
          %s1325 = scalar_lea.sflag [#allocation4], %s1324
          %s1326 = sand.u32 %s144, 1
          %s1327 = smul.addr %s1326, 16
          %s1328 = scalar_lea.vmem [#allocation3], %s1327
          %1330 = dma.done %s1325, 256
        $region52: #{tpu_custom_call.1} parent=47 // pred_fallthru
          _
      $region48: #{tpu_custom_call.1} parent=5 // pred_fallthru
        _
    $region6: #{tpu_custom_call.1} parent=1 // loop_footer
      %s19 = sadd.s32 1, %s15
    $region7: #{tpu_custom_call.1} parent=1 // loop_footer_branch
      %14 = sbr.rel target = $region3
    $region8: #{tpu_custom_call.1} parent=1 // loop_exit
      _
    %1331 = vsyncpa [#allocation4], 1
    %s1332 = scalar_lea.sflag [#allocation4], 1
    %1333 = vsyncpa %s1332, 1

// kernel: tpu_custom_call.1
$region0: #{tpu_custom_call.1}
  #allocation0 [shape = 'u32[]', space=smem, size = 0x4, offset = 0x4, fixed_abs, tag = 'smem constant byte address 0x4 - core index']
  #allocation1 [shape = 'u32[72,128]{1,0:T(1,128)}', space=vmem, size = 0x9000, scoped, tag = 'internal scratch']
  #allocation2 [shape = 'f32[1,1]{1,0:T(1,128)S(6)}', space=smem, size = 0x200, scoped, tag = 'scoped memory for tpu_custom_call.1']
  %s0 = inlined_call_operand.vmem [shape: f32[256,64], index: 0, kind: input, shape index: {}]
  %s1 = inlined_call_operand.vmem [shape: f32[256,32], index: 1, kind: input, shape index: {}]
  %s2 = inlined_call_operand.vmem [shape: f32[64,33], index: 2, kind: input, shape index: {}]
  %s3 = inlined_call_operand.vmem [shape: f32[32,33], index: 3, kind: input, shape index: {}]
  %s4 = inlined_call_operand.<no memory space> [shape: f32[1,1], index: 4, kind: input, shape index: {}]
  %s5 = inlined_call_operand.vmem [shape: f32[32,8,8], index: 5, kind: output, shape index: {}]
  %s6 = sld [smem:[#allocation0]]
  $region53: #{tpu_custom_call.1} parent=0
    _
  %s8 = ssub.s32 1, %s6
  %s9 = scalar_select 0, %s8, %s6
  %10 = sst [smem:[#allocation2]] %s4
  loop: start=0, step=1, limit=4
  $region2: #{tpu_custom_call.1} parent=0 // loop_pre_header
    _
  $region3: #{tpu_custom_call.1} parent=0 // loop_header
    %s12 = sphi 0, %s16
    %p13 = scmp.ge.s32.totalorder %s12, 4
    %s22 = sphi 0, %s24
    %s25 = sphi 0, %s22
    %s26 = sphi 0, %s25
    %s42 = sphi 0, %s26
    %s48 = sphi 0, %s50
    %s51 = sphi 0, %s48
    %s52 = sphi 0, %s51
    %s68 = sphi 0, %s52
    %s72 = sphi 0, %s72
    %s74 = sphi 0, %s72
    %s75 = sphi 0, %s74
    %s89 = sphi 0, %s75
    %s93 = sphi 0, %s93
    %s95 = sphi 0, %s93
    %s96 = sphi 0, %s95
    %s110 = sphi 0, %s96
    %s114 = sphi 0, %s114
    %s116 = sphi 0, %s114
    %s117 = sphi 0, %s116
    %s131 = sphi 0, %s117
    %s137 = sphi 0, %s139
    %s140 = sphi 0, %s137
    %s141 = sphi 0, %s140
    %s157 = sphi 0, %s141
  $region4: #{tpu_custom_call.1} parent=0 // loop_header_branch
    %15 = sbr.rel (%p13) target = $region8
  $region5: #{tpu_custom_call.1} parent=0 // loop_body
    %s17 = ssub.s32 %s12, 1
    %s18 = ssub.s32 %s12, 2
    %s19 = sadd.s32 %s12, 1
    %s20 = ssub.s32 %s12, %s19
    %p21 = scmp.eq.s32.totalorder %s20, 0
    %s23 = sadd.s32 %s22, 1
    %s24 = scalar_select %p21, %s22, %s23
    %p27 = pneg %p21
    %p28 = scmp.eq.s32.totalorder %s12, 1
    %p29 = por %p27, %p28
    %p30 = scmp.ne.s32.totalorder %s22, %s25
    %p31 = scmp.eq.s32.totalorder %s12, 0
    %p32 = por %p30, %p31
    %p33 = scmp.ne.s32.totalorder %s22, %s25
    %p34 = scmp.eq.s32.totalorder %s17, 1
    %p35 = por %p33, %p34
    %p36 = scmp.ne.s32.totalorder %s25, %s26
    %p37 = scmp.eq.s32.totalorder %s17, 0
    %p38 = por %p36, %p37
    %p39 = scmp.ne.s32.totalorder %s25, %s26
    %p40 = scmp.eq.s32.totalorder %s18, 1
    %p41 = por %p39, %p40
    %p43 = scmp.ne.s32.totalorder %s26, %s42
    %p44 = scmp.eq.s32.totalorder %s18, 0
    %p45 = por %p43, %p44
    %s46 = ssub.s32 %s12, %s19
    %p47 = scmp.eq.s32.totalorder %s46, 0
    %s49 = sadd.s32 %s48, 1
    %s50 = scalar_select %p47, %s48, %s49
    %p53 = pneg %p47
    %p54 = scmp.eq.s32.totalorder %s12, 1
    %p55 = por %p53, %p54
    %p56 = scmp.ne.s32.totalorder %s48, %s51
    %p57 = scmp.eq.s32.totalorder %s12, 0
    %p58 = por %p56, %p57
    %p59 = scmp.ne.s32.totalorder %s48, %s51
    %p60 = scmp.eq.s32.totalorder %s17, 1
    %p61 = por %p59, %p60
    %p62 = scmp.ne.s32.totalorder %s51, %s52
    %p63 = scmp.eq.s32.totalorder %s17, 0
    %p64 = por %p62, %p63
    %p65 = scmp.ne.s32.totalorder %s51, %s52
    %p66 = scmp.eq.s32.totalorder %s18, 1
    %p67 = por %p65, %p66
    %p69 = scmp.ne.s32.totalorder %s52, %s68
    %p70 = scmp.eq.s32.totalorder %s18, 0
    %p71 = por %p69, %p70
    %s73 = sadd.s32 %s72, 1
    %p76 = scmp.eq.s32.totalorder %s12, 1
    %p77 = scmp.ne.s32.totalorder %s72, %s74
    %p78 = scmp.eq.s32.totalorder %s12, 0
    %p79 = por %p77, %p78
    %p80 = scmp.ne.s32.totalorder %s72, %s74
    %p81 = scmp.eq.s32.totalorder %s17, 1
    %p82 = por %p80, %p81
    %p83 = scmp.ne.s32.totalorder %s74, %s75
    %p84 = scmp.eq.s32.totalorder %s17, 0
    %p85 = por %p83, %p84
    %p86 = scmp.ne.s32.totalorder %s74, %s75
    %p87 = scmp.eq.s32.totalorder %s18, 1
    %p88 = por %p86, %p87
    %p90 = scmp.ne.s32.totalorder %s75, %s89
    %p91 = scmp.eq.s32.totalorder %s18, 0
    %p92 = por %p90, %p91
    %s94 = sadd.s32 %s93, 1
    %p97 = scmp.eq.s32.totalorder %s12, 1
    %p98 = scmp.ne.s32.totalorder %s93, %s95
    %p99 = scmp.eq.s32.totalorder %s12, 0
    %p100 = por %p98, %p99
    %p101 = scmp.ne.s32.totalorder %s93, %s95
    %p102 = scmp.eq.s32.totalorder %s17, 1
    %p103 = por %p101, %p102
    %p104 = scmp.ne.s32.totalorder %s95, %s96
    %p105 = scmp.eq.s32.totalorder %s17, 0
    %p106 = por %p104, %p105
    %p107 = scmp.ne.s32.totalorder %s95, %s96
    %p108 = scmp.eq.s32.totalorder %s18, 1
    %p109 = por %p107, %p108
    %p111 = scmp.ne.s32.totalorder %s96, %s110
    %p112 = scmp.eq.s32.totalorder %s18, 0
    %p113 = por %p111, %p112
    %s115 = sadd.s32 %s114, 1
    %p118 = scmp.eq.s32.totalorder %s12, 1
    %p119 = scmp.ne.s32.totalorder %s114, %s116
    %p120 = scmp.eq.s32.totalorder %s12, 0
    %p121 = por %p119, %p120
    %p122 = scmp.ne.s32.totalorder %s114, %s116
    %p123 = scmp.eq.s32.totalorder %s17, 1
    %p124 = por %p122, %p123
    %p125 = scmp.ne.s32.totalorder %s116, %s117
    %p126 = scmp.eq.s32.totalorder %s17, 0
    %p127 = por %p125, %p126
    %p128 = scmp.ne.s32.totalorder %s116, %s117
    %p129 = scmp.eq.s32.totalorder %s18, 1
    %p130 = por %p128, %p129
    %p132 = scmp.ne.s32.totalorder %s117, %s131
    %p133 = scmp.eq.s32.totalorder %s18, 0
    %p134 = por %p132, %p133
    %s135 = ssub.s32 %s12, %s19
    %p136 = scmp.eq.s32.totalorder %s135, 0
    %s138 = sadd.s32 %s137, 1
    %s139 = scalar_select %p136, %s137, %s138
    %p142 = pneg %p136
    %p143 = scmp.eq.s32.totalorder %s12, 1
    %p144 = por %p142, %p143
    %p145 = scmp.ne.s32.totalorder %s137, %s140
    %p146 = scmp.eq.s32.totalorder %s12, 0
    %p147 = por %p145, %p146
    %p148 = scmp.ne.s32.totalorder %s137, %s140
    %p149 = scmp.eq.s32.totalorder %s17, 1
    %p150 = por %p148, %p149
    %p151 = scmp.ne.s32.totalorder %s140, %s141
    %p152 = scmp.eq.s32.totalorder %s17, 0
    %p153 = por %p151, %p152
    %p154 = scmp.ne.s32.totalorder %s140, %s141
    %p155 = scmp.eq.s32.totalorder %s18, 1
    %p156 = por %p154, %p155
    %p158 = scmp.ne.s32.totalorder %s141, %s157
    %p159 = scmp.eq.s32.totalorder %s18, 0
    %p160 = por %p158, %p159
    %p161 = scmp.le.s32.totalorder 1, %s12
    %p162 = scmp.lt.s32.totalorder %s12, 3
    %p163 = pnand %p161, %p162
    %p164 = pneg %p163
    // Predicated region
    $region9: #{tpu_custom_call.1} parent=5 // pred_check
      _
    $region10: #{tpu_custom_call.1} parent=5 // pred_check_branch
      %166 = sbr.rel (%p163) target = $region12
    $region11: #{tpu_custom_call.1} parent=5 // pred_region
      %s167 = ssub.s32 %s12, 1
      // Predicated region
      $region13: #{tpu_custom_call.1} parent=11 // pred_check
        %p168 = pneg %p85
      $region14: #{tpu_custom_call.1} parent=11 // pred_check_branch
        %170 = sbr.rel (%p168) target = $region16
      $region15: #{tpu_custom_call.1} parent=11 // pred_region
        _
      $region16: #{tpu_custom_call.1} parent=11 // pred_fallthru
        _
      // Predicated region
      $region17: #{tpu_custom_call.1} parent=11 // pred_check
        %p171 = pneg %p106
      $region18: #{tpu_custom_call.1} parent=11 // pred_check_branch
        %173 = sbr.rel (%p171) target = $region20
      $region19: #{tpu_custom_call.1} parent=11 // pred_region
        _
      $region20: #{tpu_custom_call.1} parent=11 // pred_fallthru
        _
      // Predicated region
      $region21: #{tpu_custom_call.1} parent=11 // pred_check
        %p174 = pneg %p127
      $region22: #{tpu_custom_call.1} parent=11 // pred_check_branch
        %176 = sbr.rel (%p174) target = $region24
      $region23: #{tpu_custom_call.1} parent=11 // pred_region
        _
      $region24: #{tpu_custom_call.1} parent=11 // pred_fallthru
        _
    $region12: #{tpu_custom_call.1} parent=5 // pred_fallthru
      _
    %p177 = scmp.lt.s32.totalorder %s12, 2
    // Predicated region
    $region25: #{tpu_custom_call.1} parent=5 // pred_check
      %p178 = pneg %p177
    $region26: #{tpu_custom_call.1} parent=5 // pred_check_branch
      %180 = sbr.rel (%p178) target = $region28
    $region27: #{tpu_custom_call.1} parent=5 // pred_region
      // Predicated region
      $region29: #{tpu_custom_call.1} parent=27 // pred_check
        %p181 = pneg %p32
      $region30: #{tpu_custom_call.1} parent=27 // pred_check_branch
        %183 = sbr.rel (%p181) target = $region32
      $region31: #{tpu_custom_call.1} parent=27 // pred_region
        %s184 = smul.u32 16, %s12
        %p185 = scmp.lt.s32.totalorder %s184, 31
        %s186 = scalar_select %p185, %s184, 31
        %s187 = smul.addr %s186, 8
        %s188 = scalar_lea.vmem %s0, %s187
        %s189 = smul.u32 16, %s12
      $region32: #{tpu_custom_call.1} parent=27 // pred_fallthru
        _
      // Predicated region
      $region33: #{tpu_custom_call.1} parent=27 // pred_check
        %p190 = pneg %p58
      $region34: #{tpu_custom_call.1} parent=27 // pred_check_branch
        %192 = sbr.rel (%p190) target = $region36
      $region35: #{tpu_custom_call.1} parent=27 // pred_region
        %s193 = smul.u32 16, %s12
        %p194 = scmp.lt.s32.totalorder %s193, 31
        %s195 = scalar_select %p194, %s193, 31
        %s196 = smul.addr %s195, 8
        %s197 = scalar_lea.vmem %s1, %s196
        %s198 = smul.u32 16, %s12
      $region36: #{tpu_custom_call.1} parent=27 // pred_fallthru
        _
    $region28: #{tpu_custom_call.1} parent=5 // pred_fallthru
      _
    %p199 = scmp.le.s32.totalorder 1, %s12
    %p200 = scmp.lt.s32.totalorder %s12, 3
    %p201 = pnand %p199, %p200
    %p202 = pneg %p201
    // Predicated region
    $region37: #{tpu_custom_call.1} parent=5 // pred_check
      _
    $region38: #{tpu_custom_call.1} parent=5 // pred_check_branch
      %204 = sbr.rel (%p201) target = $region40
    $region39: #{tpu_custom_call.1} parent=5 // pred_region
      %s205 = ssub.s32 %s12, 1
      %s206 = smul.u32 16, %s17
      %p207 = scmp.lt.s32.totalorder %s206, 31
      %s208 = scalar_select %p207, %s206, 31
      %s209 = smul.addr %s208, 8
      %s210 = scalar_lea.vmem %s0, %s209
      %p211 = pneg %p38
      %p212 = pneg %p35
      %s213 = smul.u32 16, %s17
      %p214 = scmp.lt.s32.totalorder %s213, 31
      %s215 = scalar_select %p214, %s213, 31
      %s216 = smul.addr %s215, 8
      %s217 = scalar_lea.vmem %s1, %s216
      %p218 = pneg %p64
      %p219 = pneg %p61
      %p220 = pneg %p85
      %p221 = pneg %p82
      %p222 = pneg %p106
      %p223 = pneg %p103
      %p224 = pneg %p127
      %p225 = pneg %p124
      %p226 = pneg %p153
      %p227 = pneg %p150
      %s228 = smul.u32 16, %s17
      %p229 = scmp.lt.s32.totalorder %s228, 31
      %s230 = scalar_select %p229, %s228, 31
      %s231 = smul.addr %s230, 8
      %s232 = scalar_lea.vmem %s5, %s231
      %s233 = smul.u32 16, %s17
      %p234 = scmp.lt.s32.totalorder %s233, 31
      %s235 = scalar_select %p234, %s233, 31
      %s236 = smul.addr %s235, 8
      %s237 = scalar_lea.vmem %s0, %s236
      %s238 = smul.u32 16, %s17
      %s239 = smul.u32 16, %s17
      %p240 = scmp.lt.s32.totalorder %s239, 31
      %s241 = scalar_select %p240, %s239, 31
      %s242 = smul.addr %s241, 8
      %s243 = scalar_lea.vmem %s1, %s242
      %s244 = smul.u32 16, %s17
      %s245 = smul.u32 16, %s17
      %p246 = scmp.lt.s32.totalorder %s245, 31
      %s247 = scalar_select %p246, %s245, 31
      %s248 = smul.addr %s247, 8
      %s249 = scalar_lea.vmem %s5, %s248
      %s250 = smul.u32 16, %s17
      %v251 = vld [vmem:[%s237] sm:$0xff]
      %v252 = vld [vmem:[%s237 + $0x8] sm:$0xff]
      %v253 = vld [vmem:[%s237 + $0x10] sm:$0xff]
      %v254 = vld [vmem:[%s237 + $0x18] sm:$0xff]
      %v255 = vld [vmem:[%s237 + $0x20] sm:$0xff]
      %v256 = vld [vmem:[%s237 + $0x28] sm:$0xff]
      %v257 = vld [vmem:[%s237 + $0x30] sm:$0xff]
      %v258 = vld [vmem:[%s237 + $0x38] sm:$0xff]
      %v259 = vld [vmem:[%s237 + $0x40] sm:$0xff]
      %v260 = vld [vmem:[%s237 + $0x48] sm:$0xff]
      %v261 = vld [vmem:[%s237 + $0x50] sm:$0xff]
      %v262 = vld [vmem:[%s237 + $0x58] sm:$0xff]
      %v263 = vld [vmem:[%s237 + $0x60] sm:$0xff]
      %v264 = vld [vmem:[%s237 + $0x68] sm:$0xff]
      %v265 = vld [vmem:[%s237 + $0x70] sm:$0xff]
      %v266 = vld [vmem:[%s237 + $0x78] sm:$0xff]
      %v267 = vld [vmem:[%s2] sm:$0xff]
      %v268 = vld [vmem:[%s2 + $0x8] sm:$0xff]
      %v269 = vld [vmem:[%s2 + $0x10] sm:$0xff]
      %v270 = vld [vmem:[%s2 + $0x18] sm:$0xff]
      %v271 = vld [vmem:[%s2 + $0x20] sm:$0xff]
      %v272 = vld [vmem:[%s2 + $0x28] sm:$0xff]
      %v273 = vld [vmem:[%s2 + $0x30] sm:$0xff]
      %v274 = vld [vmem:[%s2 + $0x38] sm:$0xff]
      %v275 = vld [vmem:[%s243] sm:$0xff]
      %v276 = vld [vmem:[%s243 + $0x8] sm:$0xff]
      %v277 = vld [vmem:[%s243 + $0x10] sm:$0xff]
      %v278 = vld [vmem:[%s243 + $0x18] sm:$0xff]
      %v279 = vld [vmem:[%s243 + $0x20] sm:$0xff]
      %v280 = vld [vmem:[%s243 + $0x28] sm:$0xff]
      %v281 = vld [vmem:[%s243 + $0x30] sm:$0xff]
      %v282 = vld [vmem:[%s243 + $0x38] sm:$0xff]
      %v283 = vld [vmem:[%s243 + $0x40] sm:$0xff]
      %v284 = vld [vmem:[%s243 + $0x48] sm:$0xff]
      %v285 = vld [vmem:[%s243 + $0x50] sm:$0xff]
      %v286 = vld [vmem:[%s243 + $0x58] sm:$0xff]
      %v287 = vld [vmem:[%s243 + $0x60] sm:$0xff]
      %v288 = vld [vmem:[%s243 + $0x68] sm:$0xff]
      %v289 = vld [vmem:[%s243 + $0x70] sm:$0xff]
      %v290 = vld [vmem:[%s243 + $0x78] sm:$0xff]
      %v291 = vld [vmem:[%s3] sm:$0xff]
      %v292 = vld [vmem:[%s3 + $0x8] sm:$0xff]
      %v293 = vld [vmem:[%s3 + $0x10] sm:$0xff]
      %v294 = vld [vmem:[%s3 + $0x18] sm:$0xff]
      %vm295 = vcmask 261120
      %v297 = vsel %vm295, %v275, 0
      %v300 = vsel %vm295, %v276, 0
      %v303 = vsel %vm295, %v277, 0
      %v306 = vsel %vm295, %v278, 0
      %v309 = vsel %vm295, %v279, 0
      %v312 = vsel %vm295, %v280, 0
      %v315 = vsel %vm295, %v281, 0
      %v318 = vsel %vm295, %v282, 0
      %v321 = vsel %vm295, %v283, 0
      %v324 = vsel %vm295, %v284, 0
      %v327 = vsel %vm295, %v285, 0
      %v330 = vsel %vm295, %v286, 0
      %v333 = vsel %vm295, %v287, 0
      %v336 = vsel %vm295, %v288, 0
      %v339 = vsel %vm295, %v289, 0
      %v342 = vsel %vm295, %v290, 0
      %344 = vmatpush.msra.mxu0 0.0
      %345 = vmatpush.msra.mxu0 0.0
      %346 = vmatpush.msra.mxu0 0.0
      %347 = vmatpush.msra.mxu0 0.0
      %348 = vmatpush.msra.mxu0 0.0
      %349 = vmatpush.msra.mxu0 0.0
      %350 = vmatpush.msra.mxu0 0.0
      %351 = vmatpush.msra.mxu0 0.0
      %352 = vmatpush.msra.mxu0 0.0
      %353 = vmatpush.msra.mxu0 0.0
      %354 = vmatpush.msra.mxu0 0.0
      %355 = vmatpush.msra.mxu0 0.0
      %356 = vmatpush.msra.mxu0 %v294
      %357 = vmatpush.msra.mxu0 %v293
      %358 = vmatpush.msra.mxu0 %v292
      %359 = vmatpush.msra.mxu0 %v291
      %360 = vmatmul.f32.gmra.mxu0 %v297
      %v361 = vpop.f32.mrf.mxu0
      %v362 = vadd.f32 0.0, %v361
      %363 = vmatmul.f32.gmra.mxu0 %v300
      %v364 = vpop.f32.mrf.mxu0
      %v365 = vadd.f32 0.0, %v364
      %366 = vmatmul.f32.gmra.mxu0 %v303
      %v367 = vpop.f32.mrf.mxu0
      %v368 = vadd.f32 0.0, %v367
      %369 = vmatmul.f32.gmra.mxu0 %v306
      %v370 = vpop.f32.mrf.mxu0
      %v371 = vadd.f32 0.0, %v370
      %372 = vmatmul.f32.gmra.mxu0 %v309
      %v373 = vpop.f32.mrf.mxu0
      %v374 = vadd.f32 0.0, %v373
      %375 = vmatmul.f32.gmra.mxu0 %v312
      %v376 = vpop.f32.mrf.mxu0
      %v377 = vadd.f32 0.0, %v376
      %378 = vmatmul.f32.gmra.mxu0 %v315
      %v379 = vpop.f32.mrf.mxu0
      %v380 = vadd.f32 0.0, %v379
      %381 = vmatmul.f32.gmra.mxu0 %v318
      %v382 = vpop.f32.mrf.mxu0
      %v383 = vadd.f32 0.0, %v382
      %384 = vmatmul.f32.gmra.mxu0 %v321
      %v385 = vpop.f32.mrf.mxu0
      %v386 = vadd.f32 0.0, %v385
      %387 = vmatmul.f32.gmra.mxu0 %v324
      %v388 = vpop.f32.mrf.mxu0
      %v389 = vadd.f32 0.0, %v388
      %390 = vmatmul.f32.gmra.mxu0 %v327
      %v391 = vpop.f32.mrf.mxu0
      %v392 = vadd.f32 0.0, %v391
      %393 = vmatmul.f32.gmra.mxu0 %v330
      %v394 = vpop.f32.mrf.mxu0
      %v395 = vadd.f32 0.0, %v394
      %396 = vmatmul.f32.gmra.mxu0 %v333
      %v397 = vpop.f32.mrf.mxu0
      %v398 = vadd.f32 0.0, %v397
      %399 = vmatmul.f32.gmra.mxu0 %v336
      %v400 = vpop.f32.mrf.mxu0
      %v401 = vadd.f32 0.0, %v400
      %402 = vmatmul.f32.gmra.mxu0 %v339
      %v403 = vpop.f32.mrf.mxu0
      %v404 = vadd.f32 0.0, %v403
      %405 = vmatmul.f32.gmra.mxu0 %v342
      %v406 = vpop.f32.mrf.mxu0
      %v407 = vadd.f32 0.0, %v406
      %408 = vdwg.mxu0
      %v409 = vlaneseq
      %v410 = vand.u32 %v409, 127
      %vm411 = vcmp.eq.s32.totalorder %v410, 32
      %v412 = vsel %vm411, 1.0, %v362
      %v413 = vsel %vm411, 1.0, %v365
      %v414 = vsel %vm411, 1.0, %v368
      %v415 = vsel %vm411, 1.0, %v371
      %v416 = vsel %vm411, 1.0, %v374
      %v417 = vsel %vm411, 1.0, %v377
      %v418 = vsel %vm411, 1.0, %v380
      %v419 = vsel %vm411, 1.0, %v383
      %v420 = vsel %vm411, 1.0, %v386
      %v421 = vsel %vm411, 1.0, %v389
      %v422 = vsel %vm411, 1.0, %v392
      %v423 = vsel %vm411, 1.0, %v395
      %v424 = vsel %vm411, 1.0, %v398
      %v425 = vsel %vm411, 1.0, %v401
      %v426 = vsel %vm411, 1.0, %v404
      %v427 = vsel %vm411, 1.0, %v407
      %s428 = sld [smem:[#allocation2]]
      %v429 = vstv %s428
      %v430 = vadd.f32 %v362, %v429
      %v431 = vadd.f32 %v365, %v429
      %v432 = vadd.f32 %v368, %v429
      %v433 = vadd.f32 %v371, %v429
      %v434 = vadd.f32 %v374, %v429
      %v435 = vadd.f32 %v377, %v429
      %v436 = vadd.f32 %v380, %v429
      %v437 = vadd.f32 %v383, %v429
      %v438 = vadd.f32 %v386, %v429
      %v439 = vadd.f32 %v389, %v429
      %v440 = vadd.f32 %v392, %v429
      %v441 = vadd.f32 %v395, %v429
      %v442 = vadd.f32 %v398, %v429
      %v443 = vadd.f32 %v401, %v429
      %v444 = vadd.f32 %v404, %v429
      %v445 = vadd.f32 %v407, %v429
      %v446 = vsel %vm411, %v430, 0.0
      %v447 = vsel %vm411, %v431, 0.0
      %v448 = vsel %vm411, %v432, 0.0
      %v449 = vsel %vm411, %v433, 0.0
      %v450 = vsel %vm411, %v434, 0.0
      %v451 = vsel %vm411, %v435, 0.0
      %v452 = vsel %vm411, %v436, 0.0
      %v453 = vsel %vm411, %v437, 0.0
      %v454 = vsel %vm411, %v438, 0.0
      %v455 = vsel %vm411, %v439, 0.0
      %v456 = vsel %vm411, %v440, 0.0
      %v457 = vsel %vm411, %v441, 0.0
      %v458 = vsel %vm411, %v442, 0.0
      %v459 = vsel %vm411, %v443, 0.0
      %v460 = vsel %vm411, %v444, 0.0
      %v461 = vsel %vm411, %v445, 0.0
      %vm462 = vcmask 523264
      %v464 = vsel %vm462, %v251, 0
      %v467 = vsel %vm462, %v252, 0
      %v470 = vsel %vm462, %v253, 0
      %v473 = vsel %vm462, %v254, 0
      %v476 = vsel %vm462, %v255, 0
      %v479 = vsel %vm462, %v256, 0
      %v482 = vsel %vm462, %v257, 0
      %v485 = vsel %vm462, %v258, 0
      %v488 = vsel %vm462, %v259, 0
      %v491 = vsel %vm462, %v260, 0
      %v494 = vsel %vm462, %v261, 0
      %v497 = vsel %vm462, %v262, 0
      %v500 = vsel %vm462, %v263, 0
      %v503 = vsel %vm462, %v264, 0
      %v506 = vsel %vm462, %v265, 0
      %v509 = vsel %vm462, %v266, 0
      %511 = vmatpush.msra.mxu0 0.0
      %512 = vmatpush.msra.mxu0 0.0
      %513 = vmatpush.msra.mxu0 0.0
      %514 = vmatpush.msra.mxu0 0.0
      %515 = vmatpush.msra.mxu0 0.0
      %516 = vmatpush.msra.mxu0 0.0
      %517 = vmatpush.msra.mxu0 0.0
      %518 = vmatpush.msra.mxu0 0.0
      %519 = vmatpush.msra.mxu0 %v274
      %520 = vmatpush.msra.mxu0 %v273
      %521 = vmatpush.msra.mxu0 %v272
      %522 = vmatpush.msra.mxu0 %v271
      %523 = vmatpush.msra.mxu0 %v270
      %524 = vmatpush.msra.mxu0 %v269
      %525 = vmatpush.msra.mxu0 %v268
      %526 = vmatpush.msra.mxu0 %v267
      %527 = vmatmul.f32.gmra.mxu0 %v464
      %v528 = vpop.f32.mrf.mxu0
      %v529 = vadd.f32 %v446, %v528
      %530 = vmatmul.f32.gmra.mxu0 %v467
      %v531 = vpop.f32.mrf.mxu0
      %v532 = vadd.f32 %v447, %v531
      %533 = vmatmul.f32.gmra.mxu0 %v470
      %v534 = vpop.f32.mrf.mxu0
      %v535 = vadd.f32 %v448, %v534
      %536 = vmatmul.f32.gmra.mxu0 %v473
      %v537 = vpop.f32.mrf.mxu0
      %v538 = vadd.f32 %v449, %v537
      %539 = vmatmul.f32.gmra.mxu0 %v476
      %v540 = vpop.f32.mrf.mxu0
      %v541 = vadd.f32 %v450, %v540
      %542 = vmatmul.f32.gmra.mxu0 %v479
      %v543 = vpop.f32.mrf.mxu0
      %v544 = vadd.f32 %v451, %v543
      %545 = vmatmul.f32.gmra.mxu0 %v482
      %v546 = vpop.f32.mrf.mxu0
      %v547 = vadd.f32 %v452, %v546
      %548 = vmatmul.f32.gmra.mxu0 %v485
      %v549 = vpop.f32.mrf.mxu0
      %v550 = vadd.f32 %v453, %v549
      %551 = vmatmul.f32.gmra.mxu0 %v488
      %v552 = vpop.f32.mrf.mxu0
      %v553 = vadd.f32 %v454, %v552
      %554 = vmatmul.f32.gmra.mxu0 %v491
      %v555 = vpop.f32.mrf.mxu0
      %v556 = vadd.f32 %v455, %v555
      %557 = vmatmul.f32.gmra.mxu0 %v494
      %v558 = vpop.f32.mrf.mxu0
      %v559 = vadd.f32 %v456, %v558
      %560 = vmatmul.f32.gmra.mxu0 %v497
      %v561 = vpop.f32.mrf.mxu0
      %v562 = vadd.f32 %v457, %v561
      %563 = vmatmul.f32.gmra.mxu0 %v500
      %v564 = vpop.f32.mrf.mxu0
      %v565 = vadd.f32 %v458, %v564
      %566 = vmatmul.f32.gmra.mxu0 %v503
      %v567 = vpop.f32.mrf.mxu0
      %v568 = vadd.f32 %v459, %v567
      %569 = vmatmul.f32.gmra.mxu0 %v506
      %v570 = vpop.f32.mrf.mxu0
      %v571 = vadd.f32 %v460, %v570
      %572 = vmatmul.f32.gmra.mxu0 %v509
      %v573 = vpop.f32.mrf.mxu0
      %v574 = vadd.f32 %v461, %v573
      %575 = vdwg.mxu0
      %vm576 = vcmask 269312
      %v578 = vsel %vm576, %v412, 0
      %v581 = vsel %vm576, %v529, 0
      %583 = vmatpush.xpose.msra.mxu0 0.0
      %584 = vmatpush.xpose.msra.mxu0 0.0
      %585 = vmatpush.xpose.msra.mxu0 0.0
      %586 = vmatpush.xpose.msra.mxu0 0.0
      %587 = vmatpush.xpose.msra.mxu0 0.0
      %588 = vmatpush.xpose.msra.mxu0 0.0
      %589 = vmatpush.xpose.msra.mxu0 0.0
      %590 = vmatpush.xpose.msra.mxu0 0.0
      %591 = vmatpush.xpose.msra.mxu0 0.0
      %592 = vmatpush.xpose.msra.mxu0 0.0
      %593 = vmatpush.xpose.msra.mxu0 0.0
      %594 = vmatpush.xpose.msra.mxu0 0.0
      %595 = vmatpush.xpose.msra.mxu0 0.0
      %596 = vmatpush.xpose.msra.mxu0 0.0
      %597 = vmatpush.xpose.msra.mxu0 0.0
      %598 = vmatpush.xpose.msra.mxu0 %v581
      %599 = vmatmul.f32.gmra.mxu0 %v578
      %v600 = vpop.f32.mrf.mxu0
      %v601 = vadd.f32 0.0, %v600
      %602 = vdwg.mxu0
      %v604 = vsel %vm576, %v413, 0
      %v607 = vsel %vm576, %v532, 0
      %609 = vmatpush.xpose.msra.mxu0 0.0
      %610 = vmatpush.xpose.msra.mxu0 0.0
      %611 = vmatpush.xpose.msra.mxu0 0.0
      %612 = vmatpush.xpose.msra.mxu0 0.0
      %613 = vmatpush.xpose.msra.mxu0 0.0
      %614 = vmatpush.xpose.msra.mxu0 0.0
      %615 = vmatpush.xpose.msra.mxu0 0.0
      %616 = vmatpush.xpose.msra.mxu0 0.0
      %617 = vmatpush.xpose.msra.mxu0 0.0
      %618 = vmatpush.xpose.msra.mxu0 0.0
      %619 = vmatpush.xpose.msra.mxu0 0.0
      %620 = vmatpush.xpose.msra.mxu0 0.0
      %621 = vmatpush.xpose.msra.mxu0 0.0
      %622 = vmatpush.xpose.msra.mxu0 0.0
      %623 = vmatpush.xpose.msra.mxu0 0.0
      %624 = vmatpush.xpose.msra.mxu0 %v607
      %625 = vmatmul.f32.gmra.mxu0 %v604
      %v626 = vpop.f32.mrf.mxu0
      %v627 = vadd.f32 0.0, %v626
      %628 = vdwg.mxu0
      %v630 = vsel %vm576, %v414, 0
      %v633 = vsel %vm576, %v535, 0
      %635 = vmatpush.xpose.msra.mxu0 0.0
      %636 = vmatpush.xpose.msra.mxu0 0.0
      %637 = vmatpush.xpose.msra.mxu0 0.0
      %638 = vmatpush.xpose.msra.mxu0 0.0
      %639 = vmatpush.xpose.msra.mxu0 0.0
      %640 = vmatpush.xpose.msra.mxu0 0.0
      %641 = vmatpush.xpose.msra.mxu0 0.0
      %642 = vmatpush.xpose.msra.mxu0 0.0
      %643 = vmatpush.xpose.msra.mxu0 0.0
      %644 = vmatpush.xpose.msra.mxu0 0.0
      %645 = vmatpush.xpose.msra.mxu0 0.0
      %646 = vmatpush.xpose.msra.mxu0 0.0
      %647 = vmatpush.xpose.msra.mxu0 0.0
      %648 = vmatpush.xpose.msra.mxu0 0.0
      %649 = vmatpush.xpose.msra.mxu0 0.0
      %650 = vmatpush.xpose.msra.mxu0 %v633
      %651 = vmatmul.f32.gmra.mxu0 %v630
      %v652 = vpop.f32.mrf.mxu0
      %v653 = vadd.f32 0.0, %v652
      %654 = vdwg.mxu0
      %v656 = vsel %vm576, %v415, 0
      %v659 = vsel %vm576, %v538, 0
      %661 = vmatpush.xpose.msra.mxu0 0.0
      %662 = vmatpush.xpose.msra.mxu0 0.0
      %663 = vmatpush.xpose.msra.mxu0 0.0
      %664 = vmatpush.xpose.msra.mxu0 0.0
      %665 = vmatpush.xpose.msra.mxu0 0.0
      %666 = vmatpush.xpose.msra.mxu0 0.0
      %667 = vmatpush.xpose.msra.mxu0 0.0
      %668 = vmatpush.xpose.msra.mxu0 0.0
      %669 = vmatpush.xpose.msra.mxu0 0.0
      %670 = vmatpush.xpose.msra.mxu0 0.0
      %671 = vmatpush.xpose.msra.mxu0 0.0
      %672 = vmatpush.xpose.msra.mxu0 0.0
      %673 = vmatpush.xpose.msra.mxu0 0.0
      %674 = vmatpush.xpose.msra.mxu0 0.0
      %675 = vmatpush.xpose.msra.mxu0 0.0
      %676 = vmatpush.xpose.msra.mxu0 %v659
      %677 = vmatmul.f32.gmra.mxu0 %v656
      %v678 = vpop.f32.mrf.mxu0
      %v679 = vadd.f32 0.0, %v678
      %680 = vdwg.mxu0
      %v682 = vsel %vm576, %v416, 0
      %v685 = vsel %vm576, %v541, 0
      %687 = vmatpush.xpose.msra.mxu0 0.0
      %688 = vmatpush.xpose.msra.mxu0 0.0
      %689 = vmatpush.xpose.msra.mxu0 0.0
      %690 = vmatpush.xpose.msra.mxu0 0.0
      %691 = vmatpush.xpose.msra.mxu0 0.0
      %692 = vmatpush.xpose.msra.mxu0 0.0
      %693 = vmatpush.xpose.msra.mxu0 0.0
      %694 = vmatpush.xpose.msra.mxu0 0.0
      %695 = vmatpush.xpose.msra.mxu0 0.0
      %696 = vmatpush.xpose.msra.mxu0 0.0
      %697 = vmatpush.xpose.msra.mxu0 0.0
      %698 = vmatpush.xpose.msra.mxu0 0.0
      %699 = vmatpush.xpose.msra.mxu0 0.0
      %700 = vmatpush.xpose.msra.mxu0 0.0
      %701 = vmatpush.xpose.msra.mxu0 0.0
      %702 = vmatpush.xpose.msra.mxu0 %v685
      %703 = vmatmul.f32.gmra.mxu0 %v682
      %v704 = vpop.f32.mrf.mxu0
      %v705 = vadd.f32 0.0, %v704
      %706 = vdwg.mxu0
      %v708 = vsel %vm576, %v417, 0
      %v711 = vsel %vm576, %v544, 0
      %713 = vmatpush.xpose.msra.mxu0 0.0
      %714 = vmatpush.xpose.msra.mxu0 0.0
      %715 = vmatpush.xpose.msra.mxu0 0.0
      %716 = vmatpush.xpose.msra.mxu0 0.0
      %717 = vmatpush.xpose.msra.mxu0 0.0
      %718 = vmatpush.xpose.msra.mxu0 0.0
      %719 = vmatpush.xpose.msra.mxu0 0.0
      %720 = vmatpush.xpose.msra.mxu0 0.0
      %721 = vmatpush.xpose.msra.mxu0 0.0
      %722 = vmatpush.xpose.msra.mxu0 0.0
      %723 = vmatpush.xpose.msra.mxu0 0.0
      %724 = vmatpush.xpose.msra.mxu0 0.0
      %725 = vmatpush.xpose.msra.mxu0 0.0
      %726 = vmatpush.xpose.msra.mxu0 0.0
      %727 = vmatpush.xpose.msra.mxu0 0.0
      %728 = vmatpush.xpose.msra.mxu0 %v711
      %729 = vmatmul.f32.gmra.mxu0 %v708
      %v730 = vpop.f32.mrf.mxu0
      %v731 = vadd.f32 0.0, %v730
      %732 = vdwg.mxu0
      %v734 = vsel %vm576, %v418, 0
      %v737 = vsel %vm576, %v547, 0
      %739 = vmatpush.xpose.msra.mxu0 0.0
      %740 = vmatpush.xpose.msra.mxu0 0.0
      %741 = vmatpush.xpose.msra.mxu0 0.0
      %742 = vmatpush.xpose.msra.mxu0 0.0
      %743 = vmatpush.xpose.msra.mxu0 0.0
      %744 = vmatpush.xpose.msra.mxu0 0.0
      %745 = vmatpush.xpose.msra.mxu0 0.0
      %746 = vmatpush.xpose.msra.mxu0 0.0
      %747 = vmatpush.xpose.msra.mxu0 0.0
      %748 = vmatpush.xpose.msra.mxu0 0.0
      %749 = vmatpush.xpose.msra.mxu0 0.0
      %750 = vmatpush.xpose.msra.mxu0 0.0
      %751 = vmatpush.xpose.msra.mxu0 0.0
      %752 = vmatpush.xpose.msra.mxu0 0.0
      %753 = vmatpush.xpose.msra.mxu0 0.0
      %754 = vmatpush.xpose.msra.mxu0 %v737
      %755 = vmatmul.f32.gmra.mxu0 %v734
      %v756 = vpop.f32.mrf.mxu0
      %v757 = vadd.f32 0.0, %v756
      %758 = vdwg.mxu0
      %v760 = vsel %vm576, %v419, 0
      %v763 = vsel %vm576, %v550, 0
      %765 = vmatpush.xpose.msra.mxu0 0.0
      %766 = vmatpush.xpose.msra.mxu0 0.0
      %767 = vmatpush.xpose.msra.mxu0 0.0
      %768 = vmatpush.xpose.msra.mxu0 0.0
      %769 = vmatpush.xpose.msra.mxu0 0.0
      %770 = vmatpush.xpose.msra.mxu0 0.0
      %771 = vmatpush.xpose.msra.mxu0 0.0
      %772 = vmatpush.xpose.msra.mxu0 0.0
      %773 = vmatpush.xpose.msra.mxu0 0.0
      %774 = vmatpush.xpose.msra.mxu0 0.0
      %775 = vmatpush.xpose.msra.mxu0 0.0
      %776 = vmatpush.xpose.msra.mxu0 0.0
      %777 = vmatpush.xpose.msra.mxu0 0.0
      %778 = vmatpush.xpose.msra.mxu0 0.0
      %779 = vmatpush.xpose.msra.mxu0 0.0
      %780 = vmatpush.xpose.msra.mxu0 %v763
      %781 = vmatmul.f32.gmra.mxu0 %v760
      %v782 = vpop.f32.mrf.mxu0
      %v783 = vadd.f32 0.0, %v782
      %784 = vdwg.mxu0
      %v786 = vsel %vm576, %v420, 0
      %v789 = vsel %vm576, %v553, 0
      %791 = vmatpush.xpose.msra.mxu0 0.0
      %792 = vmatpush.xpose.msra.mxu0 0.0
      %793 = vmatpush.xpose.msra.mxu0 0.0
      %794 = vmatpush.xpose.msra.mxu0 0.0
      %795 = vmatpush.xpose.msra.mxu0 0.0
      %796 = vmatpush.xpose.msra.mxu0 0.0
      %797 = vmatpush.xpose.msra.mxu0 0.0
      %798 = vmatpush.xpose.msra.mxu0 0.0
      %799 = vmatpush.xpose.msra.mxu0 0.0
      %800 = vmatpush.xpose.msra.mxu0 0.0
      %801 = vmatpush.xpose.msra.mxu0 0.0
      %802 = vmatpush.xpose.msra.mxu0 0.0
      %803 = vmatpush.xpose.msra.mxu0 0.0
      %804 = vmatpush.xpose.msra.mxu0 0.0
      %805 = vmatpush.xpose.msra.mxu0 0.0
      %806 = vmatpush.xpose.msra.mxu0 %v789
      %807 = vmatmul.f32.gmra.mxu0 %v786
      %v808 = vpop.f32.mrf.mxu0
      %v809 = vadd.f32 0.0, %v808
      %810 = vdwg.mxu0
      %v812 = vsel %vm576, %v421, 0
      %v815 = vsel %vm576, %v556, 0
      %817 = vmatpush.xpose.msra.mxu0 0.0
      %818 = vmatpush.xpose.msra.mxu0 0.0
      %819 = vmatpush.xpose.msra.mxu0 0.0
      %820 = vmatpush.xpose.msra.mxu0 0.0
      %821 = vmatpush.xpose.msra.mxu0 0.0
      %822 = vmatpush.xpose.msra.mxu0 0.0
      %823 = vmatpush.xpose.msra.mxu0 0.0
      %824 = vmatpush.xpose.msra.mxu0 0.0
      %825 = vmatpush.xpose.msra.mxu0 0.0
      %826 = vmatpush.xpose.msra.mxu0 0.0
      %827 = vmatpush.xpose.msra.mxu0 0.0
      %828 = vmatpush.xpose.msra.mxu0 0.0
      %829 = vmatpush.xpose.msra.mxu0 0.0
      %830 = vmatpush.xpose.msra.mxu0 0.0
      %831 = vmatpush.xpose.msra.mxu0 0.0
      %832 = vmatpush.xpose.msra.mxu0 %v815
      %833 = vmatmul.f32.gmra.mxu0 %v812
      %v834 = vpop.f32.mrf.mxu0
      %v835 = vadd.f32 0.0, %v834
      %836 = vdwg.mxu0
      %v838 = vsel %vm576, %v422, 0
      %v841 = vsel %vm576, %v559, 0
      %843 = vmatpush.xpose.msra.mxu0 0.0
      %844 = vmatpush.xpose.msra.mxu0 0.0
      %845 = vmatpush.xpose.msra.mxu0 0.0
      %846 = vmatpush.xpose.msra.mxu0 0.0
      %847 = vmatpush.xpose.msra.mxu0 0.0
      %848 = vmatpush.xpose.msra.mxu0 0.0
      %849 = vmatpush.xpose.msra.mxu0 0.0
      %850 = vmatpush.xpose.msra.mxu0 0.0
      %851 = vmatpush.xpose.msra.mxu0 0.0
      %852 = vmatpush.xpose.msra.mxu0 0.0
      %853 = vmatpush.xpose.msra.mxu0 0.0
      %854 = vmatpush.xpose.msra.mxu0 0.0
      %855 = vmatpush.xpose.msra.mxu0 0.0
      %856 = vmatpush.xpose.msra.mxu0 0.0
      %857 = vmatpush.xpose.msra.mxu0 0.0
      %858 = vmatpush.xpose.msra.mxu0 %v841
      %859 = vmatmul.f32.gmra.mxu0 %v838
      %v860 = vpop.f32.mrf.mxu0
      %v861 = vadd.f32 0.0, %v860
      %862 = vdwg.mxu0
      %v864 = vsel %vm576, %v423, 0
      %v867 = vsel %vm576, %v562, 0
      %869 = vmatpush.xpose.msra.mxu0 0.0
      %870 = vmatpush.xpose.msra.mxu0 0.0
      %871 = vmatpush.xpose.msra.mxu0 0.0
      %872 = vmatpush.xpose.msra.mxu0 0.0
      %873 = vmatpush.xpose.msra.mxu0 0.0
      %874 = vmatpush.xpose.msra.mxu0 0.0
      %875 = vmatpush.xpose.msra.mxu0 0.0
      %876 = vmatpush.xpose.msra.mxu0 0.0
      %877 = vmatpush.xpose.msra.mxu0 0.0
      %878 = vmatpush.xpose.msra.mxu0 0.0
      %879 = vmatpush.xpose.msra.mxu0 0.0
      %880 = vmatpush.xpose.msra.mxu0 0.0
      %881 = vmatpush.xpose.msra.mxu0 0.0
      %882 = vmatpush.xpose.msra.mxu0 0.0
      %883 = vmatpush.xpose.msra.mxu0 0.0
      %884 = vmatpush.xpose.msra.mxu0 %v867
      %885 = vmatmul.f32.gmra.mxu0 %v864
      %v886 = vpop.f32.mrf.mxu0
      %v887 = vadd.f32 0.0, %v886
      %888 = vdwg.mxu0
      %v890 = vsel %vm576, %v424, 0
      %v893 = vsel %vm576, %v565, 0
      %895 = vmatpush.xpose.msra.mxu0 0.0
      %896 = vmatpush.xpose.msra.mxu0 0.0
      %897 = vmatpush.xpose.msra.mxu0 0.0
      %898 = vmatpush.xpose.msra.mxu0 0.0
      %899 = vmatpush.xpose.msra.mxu0 0.0
      %900 = vmatpush.xpose.msra.mxu0 0.0
      %901 = vmatpush.xpose.msra.mxu0 0.0
      %902 = vmatpush.xpose.msra.mxu0 0.0
      %903 = vmatpush.xpose.msra.mxu0 0.0
      %904 = vmatpush.xpose.msra.mxu0 0.0
      %905 = vmatpush.xpose.msra.mxu0 0.0
      %906 = vmatpush.xpose.msra.mxu0 0.0
      %907 = vmatpush.xpose.msra.mxu0 0.0
      %908 = vmatpush.xpose.msra.mxu0 0.0
      %909 = vmatpush.xpose.msra.mxu0 0.0
      %910 = vmatpush.xpose.msra.mxu0 %v893
      %911 = vmatmul.f32.gmra.mxu0 %v890
      %v912 = vpop.f32.mrf.mxu0
      %v913 = vadd.f32 0.0, %v912
      %914 = vdwg.mxu0
      %v916 = vsel %vm576, %v425, 0
      %v919 = vsel %vm576, %v568, 0
      %921 = vmatpush.xpose.msra.mxu0 0.0
      %922 = vmatpush.xpose.msra.mxu0 0.0
      %923 = vmatpush.xpose.msra.mxu0 0.0
      %924 = vmatpush.xpose.msra.mxu0 0.0
      %925 = vmatpush.xpose.msra.mxu0 0.0
      %926 = vmatpush.xpose.msra.mxu0 0.0
      %927 = vmatpush.xpose.msra.mxu0 0.0
      %928 = vmatpush.xpose.msra.mxu0 0.0
      %929 = vmatpush.xpose.msra.mxu0 0.0
      %930 = vmatpush.xpose.msra.mxu0 0.0
      %931 = vmatpush.xpose.msra.mxu0 0.0
      %932 = vmatpush.xpose.msra.mxu0 0.0
      %933 = vmatpush.xpose.msra.mxu0 0.0
      %934 = vmatpush.xpose.msra.mxu0 0.0
      %935 = vmatpush.xpose.msra.mxu0 0.0
      %936 = vmatpush.xpose.msra.mxu0 %v919
      %937 = vmatmul.f32.gmra.mxu0 %v916
      %v938 = vpop.f32.mrf.mxu0
      %v939 = vadd.f32 0.0, %v938
      %940 = vdwg.mxu0
      %v942 = vsel %vm576, %v426, 0
      %v945 = vsel %vm576, %v571, 0
      %947 = vmatpush.xpose.msra.mxu0 0.0
      %948 = vmatpush.xpose.msra.mxu0 0.0
      %949 = vmatpush.xpose.msra.mxu0 0.0
      %950 = vmatpush.xpose.msra.mxu0 0.0
      %951 = vmatpush.xpose.msra.mxu0 0.0
      %952 = vmatpush.xpose.msra.mxu0 0.0
      %953 = vmatpush.xpose.msra.mxu0 0.0
      %954 = vmatpush.xpose.msra.mxu0 0.0
      %955 = vmatpush.xpose.msra.mxu0 0.0
      %956 = vmatpush.xpose.msra.mxu0 0.0
      %957 = vmatpush.xpose.msra.mxu0 0.0
      %958 = vmatpush.xpose.msra.mxu0 0.0
      %959 = vmatpush.xpose.msra.mxu0 0.0
      %960 = vmatpush.xpose.msra.mxu0 0.0
      %961 = vmatpush.xpose.msra.mxu0 0.0
      %962 = vmatpush.xpose.msra.mxu0 %v945
      %963 = vmatmul.f32.gmra.mxu0 %v942
      %v964 = vpop.f32.mrf.mxu0
      %v965 = vadd.f32 0.0, %v964
      %966 = vdwg.mxu0
      %v968 = vsel %vm576, %v427, 0
      %v971 = vsel %vm576, %v574, 0
      %973 = vmatpush.xpose.msra.mxu0 0.0
      %974 = vmatpush.xpose.msra.mxu0 0.0
      %975 = vmatpush.xpose.msra.mxu0 0.0
      %976 = vmatpush.xpose.msra.mxu0 0.0
      %977 = vmatpush.xpose.msra.mxu0 0.0
      %978 = vmatpush.xpose.msra.mxu0 0.0
      %979 = vmatpush.xpose.msra.mxu0 0.0
      %980 = vmatpush.xpose.msra.mxu0 0.0
      %981 = vmatpush.xpose.msra.mxu0 0.0
      %982 = vmatpush.xpose.msra.mxu0 0.0
      %983 = vmatpush.xpose.msra.mxu0 0.0
      %984 = vmatpush.xpose.msra.mxu0 0.0
      %985 = vmatpush.xpose.msra.mxu0 0.0
      %986 = vmatpush.xpose.msra.mxu0 0.0
      %987 = vmatpush.xpose.msra.mxu0 0.0
      %988 = vmatpush.xpose.msra.mxu0 %v971
      %989 = vmatmul.f32.gmra.mxu0 %v968
      %v990 = vpop.f32.mrf.mxu0
      %v991 = vadd.f32 0.0, %v990
      %992 = vdwg.mxu0
      %vm993 = vcmask 64512
      %994 = vst.msk [vmem:[%s249] sm:$0xff] %vm993, %v601
      %995 = vst.msk [vmem:[%s249 + $0x8] sm:$0xff] %vm993, %v627
      %996 = vst.msk [vmem:[%s249 + $0x10] sm:$0xff] %vm993, %v653
      %997 = vst.msk [vmem:[%s249 + $0x18] sm:$0xff] %vm993, %v679
      %998 = vst.msk [vmem:[%s249 + $0x20] sm:$0xff] %vm993, %v705
      %999 = vst.msk [vmem:[%s249 + $0x28] sm:$0xff] %vm993, %v731
      %1000 = vst.msk [vmem:[%s249 + $0x30] sm:$0xff] %vm993, %v757
      %1001 = vst.msk [vmem:[%s249 + $0x38] sm:$0xff] %vm993, %v783
      %1002 = vst.msk [vmem:[%s249 + $0x40] sm:$0xff] %vm993, %v809
      %1003 = vst.msk [vmem:[%s249 + $0x48] sm:$0xff] %vm993, %v835
      %1004 = vst.msk [vmem:[%s249 + $0x50] sm:$0xff] %vm993, %v861
      %1005 = vst.msk [vmem:[%s249 + $0x58] sm:$0xff] %vm993, %v887
      %1006 = vst.msk [vmem:[%s249 + $0x60] sm:$0xff] %vm993, %v913
      %1007 = vst.msk [vmem:[%s249 + $0x68] sm:$0xff] %vm993, %v939
      %1008 = vst.msk [vmem:[%s249 + $0x70] sm:$0xff] %vm993, %v965
      %1009 = vst.msk [vmem:[%s249 + $0x78] sm:$0xff] %vm993, %v991
      %s1010 = smul.u32 16, %s17
      %p1011 = scmp.lt.s32.totalorder %s1010, 31
      %s1012 = scalar_select %p1011, %s1010, 31
      %s1013 = smul.addr %s1012, 8
      %s1014 = scalar_lea.vmem %s5, %s1013
      // Predicated region
      $region41: #{tpu_custom_call.1} parent=39 // pred_check
        %p1015 = pneg %p150
      $region42: #{tpu_custom_call.1} parent=39 // pred_check_branch
        %1017 = sbr.rel (%p1015) target = $region44
      $region43: #{tpu_custom_call.1} parent=39 // pred_region
        %s1018 = smul.u32 16, %s17
      $region44: #{tpu_custom_call.1} parent=39 // pred_fallthru
        _
    $region40: #{tpu_custom_call.1} parent=5 // pred_fallthru
      _
    %p1019 = scmp.le.s32.totalorder 2, %s12
    // Predicated region
    $region45: #{tpu_custom_call.1} parent=5 // pred_check
      %p1020 = pneg %p1019
    $region46: #{tpu_custom_call.1} parent=5 // pred_check_branch
      %1022 = sbr.rel (%p1020) target = $region48
    $region47: #{tpu_custom_call.1} parent=5 // pred_region
      %s1023 = ssub.s32 %s12, 2
      // Predicated region
      $region49: #{tpu_custom_call.1} parent=47 // pred_check
        %p1024 = pneg %p156
      $region50: #{tpu_custom_call.1} parent=47 // pred_check_branch
        %1026 = sbr.rel (%p1024) target = $region52
      $region51: #{tpu_custom_call.1} parent=47 // pred_region
        %s1027 = smul.u32 16, %s18
        %p1028 = scmp.lt.s32.totalorder %s1027, 31
        %s1029 = scalar_select %p1028, %s1027, 31
        %s1030 = smul.addr %s1029, 8
        %s1031 = scalar_lea.vmem %s5, %s1030
      $region52: #{tpu_custom_call.1} parent=47 // pred_fallthru
        _
    $region48: #{tpu_custom_call.1} parent=5 // pred_fallthru
      _
  $region6: #{tpu_custom_call.1} parent=0 // loop_footer
    %s16 = sadd.s32 1, %s12
  $region7: #{tpu_custom_call.1} parent=0 // loop_footer_branch
    %11 = sbr.rel target = $region3
  $region8: #{tpu_custom_call.1} parent=0 // loop_exit
    _

</llo_original>
